<compile_context>
chip_gen: v6e
topology: v6e:2x2x1
jax: 0.10.0
libtpu: 0.0.40
codegen_flags: <defaults>
</compile_context>

<pallas_src>
import jax
import jax.numpy as jnp
from jax.experimental import pallas as pl
from jax.experimental.pallas import tpu as pltpu


def make_embeddings_kernel(S, V, D, t_tok, eps):
    def kernel(ids_ref, wp_hbm, pos_ref, gamma_ref, beta_ref, out_ref,
               gbuf, sems):
        # ids_ref : (B*S,) int32 in SMEM (scalar prefetch)
        # wp_hbm  : (V, D//2) uint32 packed bf16 word table, left in HBM
        # pos_ref : (S, D) f32 resident positional rows
        # gbuf    : (t_tok, D//2) uint32 VMEM gather scratch
        # sems    : DMA semaphores, one per in-flight row gather
        b = pl.program_id(0)
        t = pl.program_id(1)
        base = b * S + t * t_tok

        # Launch all t_tok row gathers up front so they are in flight
        # simultaneously; wait once the whole tile has been issued.
        copies = []
        for k in range(t_tok):
            row = jnp.clip(ids_ref[base + k], 0, V - 1)   # never DMA OOB
            cp = pltpu.make_async_copy(
                wp_hbm.at[pl.ds(row, 1), :],
                gbuf.at[pl.ds(k, 1), :],
                sems.at[k])
            cp.start()
            copies.append(cp)
        for cp in copies:
            cp.wait()

        # Unpack 2 x bf16 -> f32 (a bf16 occupies the top 16 bits of an f32).
        g = gbuf[...]                                            # (t_tok, D//2) u32
        lo = pltpu.bitcast(g << 16, jnp.float32)                 # cols [0, D//2)
        hi = pltpu.bitcast(g & jnp.uint32(0xFFFF0000), jnp.float32)  # cols [D//2, D)
        x = jnp.concatenate([lo, hi], axis=-1)                   # (t_tok, D) f32

        # Add the resident positional rows for this token tile.
        start = pl.multiple_of(t * t_tok, t_tok)
        x = x + pos_ref[pl.ds(start, t_tok), :]

        # Two-pass LayerNorm (mean-subtracted variance), f32 math.
        mean = jnp.mean(x, axis=-1, keepdims=True)
        xc = x - mean
        var = jnp.mean(xc * xc, axis=-1, keepdims=True)
        y = xc * jax.lax.rsqrt(var + eps) * gamma_ref[...] + beta_ref[...]

        # TODO(synk): dropout is identity here (eval mode); training-mode
        # dropout would draw pltpu.prng_random_bits and mask/scale y.
        out_ref[0, :, :] = y

    return kernel


def roberta_embeddings(input_ids, word_emb, pos_emb, gamma, beta, eps=1e-5):
    B, S = input_ids.shape
    V, D = word_emb.shape
    C = pos_emb.shape[0]
    assert S <= C
    assert S % 8 == 0, "pad the sequence length to a multiple of 8"
    assert D % 2 == 0, "feature dim must be even for the bf16 u32-packing"

    t_tok = 16 if S % 16 == 0 else 8     # tokens gathered per grid step
    num_t = S // t_tok

    ids_flat = input_ids.reshape(-1).astype(jnp.int32)

    # bf16-quantize the word table and pack column pairs (j, j + D/2) into a
    # single uint32: halves gather bytes, keeps the row DMA 32-bit granular.
    w16 = word_emb.astype(jnp.bfloat16)
    wbits = jax.lax.bitcast_convert_type(w16, jnp.uint16).astype(jnp.uint32)
    w_packed = wbits[:, : D // 2] | (wbits[:, D // 2:] << 16)    # (V, D//2) u32

    pos_f32 = pos_emb[:S].astype(jnp.float32)                    # (S, D)
    gamma2 = gamma.reshape(1, D).astype(jnp.float32)
    beta2 = beta.reshape(1, D).astype(jnp.float32)

    kernel = make_embeddings_kernel(S, V, D, t_tok, eps)

    cost = pl.CostEstimate(
        flops=10 * B * S * D,
        transcendentals=B * S,
        bytes_accessed=B * S * D * 4        # f32 output
        + B * S * D * 2                      # packed-bf16 word-row gathers
        + S * D * 4                          # resident positional rows
        + B * S * 4,                         # token ids
    )

    return pl.pallas_call(
        kernel,
        out_shape=jax.ShapeDtypeStruct((B, S, D), jnp.float32),
        grid_spec=pltpu.PrefetchScalarGridSpec(
            num_scalar_prefetch=1,
            grid=(B, num_t),
            in_specs=[
                # packed word table stays in HBM; gathered manually per tile
                pl.BlockSpec(memory_space=pl.ANY),
                # resident positional rows (constant index -> fetched once)
                pl.BlockSpec((S, D), lambda b, t, ids: (0, 0)),
                # LayerNorm affine params
                pl.BlockSpec((1, D), lambda b, t, ids: (0, 0)),
                pl.BlockSpec((1, D), lambda b, t, ids: (0, 0)),
            ],
            out_specs=pl.BlockSpec((1, t_tok, D), lambda b, t, ids: (b, t, 0)),
            scratch_shapes=[
                pltpu.VMEM((t_tok, D // 2), jnp.uint32),
                pltpu.SemaphoreType.DMA((t_tok,)),
            ],
        ),
        compiler_params=pltpu.CompilerParams(
            dimension_semantics=("parallel", "parallel")),
        cost_estimate=cost,
    )(ids_flat, w_packed, pos_f32, gamma2, beta2)


def reference(input_ids, word_emb, pos_emb, gamma, beta, eps=1e-5):
    S = input_ids.shape[1]
    x = word_emb[input_ids]                       # (B, S, D)
    x = x + pos_emb[:S][None, :, :]
    mean = jnp.mean(x, axis=-1, keepdims=True)
    var = jnp.mean((x - mean) ** 2, axis=-1, keepdims=True)
    xhat = (x - mean) * jax.lax.rsqrt(var + eps)
    return xhat * gamma.reshape(1, 1, -1) + beta.reshape(1, 1, -1)


if __name__ == "__main__":
    # config: vocab_size=128, embedding_dimension=32, context_length=16,
    #         pad_token=1, layer_norm_eps=1e-5, hidden_dropout_p=0.1 (identity in eval)
    VOCAB, D, CONTEXT, PAD = 128, 32, 16, 1
    B, S = 2, 8
    EPS = 1e-5

    key = jax.random.PRNGKey(0)
    k_ids, k_wemb, k_pemb = jax.random.split(key, 3)

    input_ids = jax.random.randint(k_ids, (B, S), 0, VOCAB, dtype=jnp.int32)

    word_emb = jax.random.normal(k_wemb, (VOCAB, D), dtype=jnp.float32)
    # nn.Embedding(padding_idx=pad_token) zeroes that row
    word_emb = word_emb.at[PAD].set(0.0)
    pos_emb = jax.random.normal(k_pemb, (CONTEXT, D), dtype=jnp.float32)

    # nn.LayerNorm defaults: weight=1, bias=0 (wrapper handles (D,) shapes)
    gamma = jnp.ones((D,), dtype=jnp.float32)
    beta = jnp.zeros((D,), dtype=jnp.float32)

    out = roberta_embeddings(input_ids, word_emb, pos_emb, gamma, beta, EPS)
    out = jax.block_until_ready(out)

    # Reference uses the same bf16-quantized word table the kernel gathers.
    word_emb_q = word_emb.astype(jnp.bfloat16).astype(jnp.float32)
    ref = reference(input_ids, word_emb_q, pos_emb, gamma, beta, EPS)

    assert out.shape == (B, S, D)
    assert jnp.allclose(out, ref, atol=1e-5, rtol=1e-5)

    print("KERNEL_OK")
</pallas_src>

<mosaic_0001>
module attributes {stable_mosaic.version = 11 : i64} {
  func.func @kernel(%arg0: i32, %arg1: i32, %arg2: memref<16xi32, #tpu.memory_space<smem>>, %arg3: memref<128x16xi32, #tpu.memory_space<any>>, %arg4: memref<8x32xf32, #tpu.memory_space<vmem>>, %arg5: memref<1x32xf32, #tpu.memory_space<vmem>>, %arg6: memref<1x32xf32, #tpu.memory_space<vmem>>, %arg7: memref<1x8x32xf32, #tpu.memory_space<vmem>>, %arg8: memref<8x16xi32, #tpu.memory_space<vmem>>, %arg9: memref<8x!tpu.dma_semaphore, #tpu.memory_space<semaphore_mem>>) attributes {dimension_semantics = [#tpu.dimension_semantics<parallel>, #tpu.dimension_semantics<parallel>], iteration_bounds = array<i64: 2, 1>, scalar_prefetch = 1 : i64, scratch_operands = 2 : i64, tpu.core_type = #tpu.core_type<tc>, window_params = [{}, {pipeline_mode = #tpu.pipeline_mode<synchronous>, transform_indices = @transform_1, window_bounds = array<i64: 8, 32>}, {pipeline_mode = #tpu.pipeline_mode<synchronous>, transform_indices = @transform_2, window_bounds = array<i64: 1, 32>}, {pipeline_mode = #tpu.pipeline_mode<synchronous>, transform_indices = @transform_3, window_bounds = array<i64: 1, 32>}, {transform_indices = @transform_4, window_bounds = array<i64: 1, 8, 32>}]} {
    %c8_i32 = arith.constant 8 : i32
    %0 = arith.muli %arg0, %c8_i32 : i32
    %c8_i32_0 = arith.constant 8 : i32
    %1 = arith.muli %arg1, %c8_i32_0 : i32
    %2 = arith.addi %0, %1 : i32
    %c0_i32 = arith.constant 0 : i32
    %3 = arith.addi %2, %c0_i32 : i32
    %4 = arith.index_cast %3 : i32 to index
    %5 = memref.load %arg2[%4] : memref<16xi32, #tpu.memory_space<smem>>
    %c0_i32_1 = arith.constant 0 : i32
    %c127_i32 = arith.constant 127 : i32
    %6 = arith.maxsi %c0_i32_1, %5 : i32
    %7 = arith.minsi %c127_i32, %6 : i32
    %c0_i32_2 = arith.constant 0 : i32
    %c0_i32_3 = arith.constant 0 : i32
    %8 = tpu.memref_slice %arg3[%7, %c0_i32_3] : memref<128x16xi32, #tpu.memory_space<any>> -> memref<1x16xi32, #tpu.memory_space<any>>
    %c0_i32_4 = arith.constant 0 : i32
    %c0_i32_5 = arith.constant 0 : i32
    %9 = tpu.memref_slice %arg8[%c0_i32_4, %c0_i32_5] : memref<8x16xi32, #tpu.memory_space<vmem>> -> memref<1x16xi32, #tpu.memory_space<vmem>>
    %10 = tpu.memref_slice %arg9[%c0_i32_2] : memref<8x!tpu.dma_semaphore, #tpu.memory_space<semaphore_mem>> -> memref<1x!tpu.dma_semaphore, #tpu.memory_space<semaphore_mem>>
    %11 = tpu.memref_squeeze %10 : memref<1x!tpu.dma_semaphore, #tpu.memory_space<semaphore_mem>> -> memref<!tpu.dma_semaphore, #tpu.memory_space<semaphore_mem>>
    tpu.enqueue_dma source(%8 : memref<1x16xi32, #tpu.memory_space<any>>) target(%9 : memref<1x16xi32, #tpu.memory_space<vmem>>) target_semaphore(%11 : memref<!tpu.dma_semaphore, #tpu.memory_space<semaphore_mem>>)
    %c1_i32 = arith.constant 1 : i32
    %12 = arith.addi %2, %c1_i32 : i32
    %13 = arith.index_cast %12 : i32 to index
    %14 = memref.load %arg2[%13] : memref<16xi32, #tpu.memory_space<smem>>
    %c0_i32_6 = arith.constant 0 : i32
    %c127_i32_7 = arith.constant 127 : i32
    %15 = arith.maxsi %c0_i32_6, %14 : i32
    %16 = arith.minsi %c127_i32_7, %15 : i32
    %c1_i32_8 = arith.constant 1 : i32
    %c0_i32_9 = arith.constant 0 : i32
    %17 = tpu.memref_slice %arg3[%16, %c0_i32_9] : memref<128x16xi32, #tpu.memory_space<any>> -> memref<1x16xi32, #tpu.memory_space<any>>
    %c1_i32_10 = arith.constant 1 : i32
    %c0_i32_11 = arith.constant 0 : i32
    %18 = tpu.memref_slice %arg8[%c1_i32_10, %c0_i32_11] : memref<8x16xi32, #tpu.memory_space<vmem>> -> memref<1x16xi32, #tpu.memory_space<vmem>>
    %19 = tpu.memref_slice %arg9[%c1_i32_8] : memref<8x!tpu.dma_semaphore, #tpu.memory_space<semaphore_mem>> -> memref<1x!tpu.dma_semaphore, #tpu.memory_space<semaphore_mem>>
    %20 = tpu.memref_squeeze %19 : memref<1x!tpu.dma_semaphore, #tpu.memory_space<semaphore_mem>> -> memref<!tpu.dma_semaphore, #tpu.memory_space<semaphore_mem>>
    tpu.enqueue_dma source(%17 : memref<1x16xi32, #tpu.memory_space<any>>) target(%18 : memref<1x16xi32, #tpu.memory_space<vmem>>) target_semaphore(%20 : memref<!tpu.dma_semaphore, #tpu.memory_space<semaphore_mem>>)
    %c2_i32 = arith.constant 2 : i32
    %21 = arith.addi %2, %c2_i32 : i32
    %22 = arith.index_cast %21 : i32 to index
    %23 = memref.load %arg2[%22] : memref<16xi32, #tpu.memory_space<smem>>
    %c0_i32_12 = arith.constant 0 : i32
    %c127_i32_13 = arith.constant 127 : i32
    %24 = arith.maxsi %c0_i32_12, %23 : i32
    %25 = arith.minsi %c127_i32_13, %24 : i32
    %c2_i32_14 = arith.constant 2 : i32
    %c0_i32_15 = arith.constant 0 : i32
    %26 = tpu.memref_slice %arg3[%25, %c0_i32_15] : memref<128x16xi32, #tpu.memory_space<any>> -> memref<1x16xi32, #tpu.memory_space<any>>
    %c2_i32_16 = arith.constant 2 : i32
    %c0_i32_17 = arith.constant 0 : i32
    %27 = tpu.memref_slice %arg8[%c2_i32_16, %c0_i32_17] : memref<8x16xi32, #tpu.memory_space<vmem>> -> memref<1x16xi32, #tpu.memory_space<vmem>>
    %28 = tpu.memref_slice %arg9[%c2_i32_14] : memref<8x!tpu.dma_semaphore, #tpu.memory_space<semaphore_mem>> -> memref<1x!tpu.dma_semaphore, #tpu.memory_space<semaphore_mem>>
    %29 = tpu.memref_squeeze %28 : memref<1x!tpu.dma_semaphore, #tpu.memory_space<semaphore_mem>> -> memref<!tpu.dma_semaphore, #tpu.memory_space<semaphore_mem>>
    tpu.enqueue_dma source(%26 : memref<1x16xi32, #tpu.memory_space<any>>) target(%27 : memref<1x16xi32, #tpu.memory_space<vmem>>) target_semaphore(%29 : memref<!tpu.dma_semaphore, #tpu.memory_space<semaphore_mem>>)
    %c3_i32 = arith.constant 3 : i32
    %30 = arith.addi %2, %c3_i32 : i32
    %31 = arith.index_cast %30 : i32 to index
    %32 = memref.load %arg2[%31] : memref<16xi32, #tpu.memory_space<smem>>
    %c0_i32_18 = arith.constant 0 : i32
    %c127_i32_19 = arith.constant 127 : i32
    %33 = arith.maxsi %c0_i32_18, %32 : i32
    %34 = arith.minsi %c127_i32_19, %33 : i32
    %c3_i32_20 = arith.constant 3 : i32
    %c0_i32_21 = arith.constant 0 : i32
    %35 = tpu.memref_slice %arg3[%34, %c0_i32_21] : memref<128x16xi32, #tpu.memory_space<any>> -> memref<1x16xi32, #tpu.memory_space<any>>
    %c3_i32_22 = arith.constant 3 : i32
    %c0_i32_23 = arith.constant 0 : i32
    %36 = tpu.memref_slice %arg8[%c3_i32_22, %c0_i32_23] : memref<8x16xi32, #tpu.memory_space<vmem>> -> memref<1x16xi32, #tpu.memory_space<vmem>>
    %37 = tpu.memref_slice %arg9[%c3_i32_20] : memref<8x!tpu.dma_semaphore, #tpu.memory_space<semaphore_mem>> -> memref<1x!tpu.dma_semaphore, #tpu.memory_space<semaphore_mem>>
    %38 = tpu.memref_squeeze %37 : memref<1x!tpu.dma_semaphore, #tpu.memory_space<semaphore_mem>> -> memref<!tpu.dma_semaphore, #tpu.memory_space<semaphore_mem>>
    tpu.enqueue_dma source(%35 : memref<1x16xi32, #tpu.memory_space<any>>) target(%36 : memref<1x16xi32, #tpu.memory_space<vmem>>) target_semaphore(%38 : memref<!tpu.dma_semaphore, #tpu.memory_space<semaphore_mem>>)
    %c4_i32 = arith.constant 4 : i32
    %39 = arith.addi %2, %c4_i32 : i32
    %40 = arith.index_cast %39 : i32 to index
    %41 = memref.load %arg2[%40] : memref<16xi32, #tpu.memory_space<smem>>
    %c0_i32_24 = arith.constant 0 : i32
    %c127_i32_25 = arith.constant 127 : i32
    %42 = arith.maxsi %c0_i32_24, %41 : i32
    %43 = arith.minsi %c127_i32_25, %42 : i32
    %c4_i32_26 = arith.constant 4 : i32
    %c0_i32_27 = arith.constant 0 : i32
    %44 = tpu.memref_slice %arg3[%43, %c0_i32_27] : memref<128x16xi32, #tpu.memory_space<any>> -> memref<1x16xi32, #tpu.memory_space<any>>
    %c4_i32_28 = arith.constant 4 : i32
    %c0_i32_29 = arith.constant 0 : i32
    %45 = tpu.memref_slice %arg8[%c4_i32_28, %c0_i32_29] : memref<8x16xi32, #tpu.memory_space<vmem>> -> memref<1x16xi32, #tpu.memory_space<vmem>>
    %46 = tpu.memref_slice %arg9[%c4_i32_26] : memref<8x!tpu.dma_semaphore, #tpu.memory_space<semaphore_mem>> -> memref<1x!tpu.dma_semaphore, #tpu.memory_space<semaphore_mem>>
    %47 = tpu.memref_squeeze %46 : memref<1x!tpu.dma_semaphore, #tpu.memory_space<semaphore_mem>> -> memref<!tpu.dma_semaphore, #tpu.memory_space<semaphore_mem>>
    tpu.enqueue_dma source(%44 : memref<1x16xi32, #tpu.memory_space<any>>) target(%45 : memref<1x16xi32, #tpu.memory_space<vmem>>) target_semaphore(%47 : memref<!tpu.dma_semaphore, #tpu.memory_space<semaphore_mem>>)
    %c5_i32 = arith.constant 5 : i32
    %48 = arith.addi %2, %c5_i32 : i32
    %49 = arith.index_cast %48 : i32 to index
    %50 = memref.load %arg2[%49] : memref<16xi32, #tpu.memory_space<smem>>
    %c0_i32_30 = arith.constant 0 : i32
    %c127_i32_31 = arith.constant 127 : i32
    %51 = arith.maxsi %c0_i32_30, %50 : i32
    %52 = arith.minsi %c127_i32_31, %51 : i32
    %c5_i32_32 = arith.constant 5 : i32
    %c0_i32_33 = arith.constant 0 : i32
    %53 = tpu.memref_slice %arg3[%52, %c0_i32_33] : memref<128x16xi32, #tpu.memory_space<any>> -> memref<1x16xi32, #tpu.memory_space<any>>
    %c5_i32_34 = arith.constant 5 : i32
    %c0_i32_35 = arith.constant 0 : i32
    %54 = tpu.memref_slice %arg8[%c5_i32_34, %c0_i32_35] : memref<8x16xi32, #tpu.memory_space<vmem>> -> memref<1x16xi32, #tpu.memory_space<vmem>>
    %55 = tpu.memref_slice %arg9[%c5_i32_32] : memref<8x!tpu.dma_semaphore, #tpu.memory_space<semaphore_mem>> -> memref<1x!tpu.dma_semaphore, #tpu.memory_space<semaphore_mem>>
    %56 = tpu.memref_squeeze %55 : memref<1x!tpu.dma_semaphore, #tpu.memory_space<semaphore_mem>> -> memref<!tpu.dma_semaphore, #tpu.memory_space<semaphore_mem>>
    tpu.enqueue_dma source(%53 : memref<1x16xi32, #tpu.memory_space<any>>) target(%54 : memref<1x16xi32, #tpu.memory_space<vmem>>) target_semaphore(%56 : memref<!tpu.dma_semaphore, #tpu.memory_space<semaphore_mem>>)
    %c6_i32 = arith.constant 6 : i32
    %57 = arith.addi %2, %c6_i32 : i32
    %58 = arith.index_cast %57 : i32 to index
    %59 = memref.load %arg2[%58] : memref<16xi32, #tpu.memory_space<smem>>
    %c0_i32_36 = arith.constant 0 : i32
    %c127_i32_37 = arith.constant 127 : i32
    %60 = arith.maxsi %c0_i32_36, %59 : i32
    %61 = arith.minsi %c127_i32_37, %60 : i32
    %c6_i32_38 = arith.constant 6 : i32
    %c0_i32_39 = arith.constant 0 : i32
    %62 = tpu.memref_slice %arg3[%61, %c0_i32_39] : memref<128x16xi32, #tpu.memory_space<any>> -> memref<1x16xi32, #tpu.memory_space<any>>
    %c6_i32_40 = arith.constant 6 : i32
    %c0_i32_41 = arith.constant 0 : i32
    %63 = tpu.memref_slice %arg8[%c6_i32_40, %c0_i32_41] : memref<8x16xi32, #tpu.memory_space<vmem>> -> memref<1x16xi32, #tpu.memory_space<vmem>>
    %64 = tpu.memref_slice %arg9[%c6_i32_38] : memref<8x!tpu.dma_semaphore, #tpu.memory_space<semaphore_mem>> -> memref<1x!tpu.dma_semaphore, #tpu.memory_space<semaphore_mem>>
    %65 = tpu.memref_squeeze %64 : memref<1x!tpu.dma_semaphore, #tpu.memory_space<semaphore_mem>> -> memref<!tpu.dma_semaphore, #tpu.memory_space<semaphore_mem>>
    tpu.enqueue_dma source(%62 : memref<1x16xi32, #tpu.memory_space<any>>) target(%63 : memref<1x16xi32, #tpu.memory_space<vmem>>) target_semaphore(%65 : memref<!tpu.dma_semaphore, #tpu.memory_space<semaphore_mem>>)
    %c7_i32 = arith.constant 7 : i32
    %66 = arith.addi %2, %c7_i32 : i32
    %67 = arith.index_cast %66 : i32 to index
    %68 = memref.load %arg2[%67] : memref<16xi32, #tpu.memory_space<smem>>
    %c0_i32_42 = arith.constant 0 : i32
    %c127_i32_43 = arith.constant 127 : i32
    %69 = arith.maxsi %c0_i32_42, %68 : i32
    %70 = arith.minsi %c127_i32_43, %69 : i32
    %c7_i32_44 = arith.constant 7 : i32
    %c0_i32_45 = arith.constant 0 : i32
    %71 = tpu.memref_slice %arg3[%70, %c0_i32_45] : memref<128x16xi32, #tpu.memory_space<any>> -> memref<1x16xi32, #tpu.memory_space<any>>
    %c7_i32_46 = arith.constant 7 : i32
    %c0_i32_47 = arith.constant 0 : i32
    %72 = tpu.memref_slice %arg8[%c7_i32_46, %c0_i32_47] : memref<8x16xi32, #tpu.memory_space<vmem>> -> memref<1x16xi32, #tpu.memory_space<vmem>>
    %73 = tpu.memref_slice %arg9[%c7_i32_44] : memref<8x!tpu.dma_semaphore, #tpu.memory_space<semaphore_mem>> -> memref<1x!tpu.dma_semaphore, #tpu.memory_space<semaphore_mem>>
    %74 = tpu.memref_squeeze %73 : memref<1x!tpu.dma_semaphore, #tpu.memory_space<semaphore_mem>> -> memref<!tpu.dma_semaphore, #tpu.memory_space<semaphore_mem>>
    tpu.enqueue_dma source(%71 : memref<1x16xi32, #tpu.memory_space<any>>) target(%72 : memref<1x16xi32, #tpu.memory_space<vmem>>) target_semaphore(%74 : memref<!tpu.dma_semaphore, #tpu.memory_space<semaphore_mem>>)
    %c0_i32_48 = arith.constant 0 : i32
    %c0_i32_49 = arith.constant 0 : i32
    %75 = tpu.memref_slice %arg3[%7, %c0_i32_49] : memref<128x16xi32, #tpu.memory_space<any>> -> memref<1x16xi32, #tpu.memory_space<any>>
    %c0_i32_50 = arith.constant 0 : i32
    %c0_i32_51 = arith.constant 0 : i32
    %76 = tpu.memref_slice %arg8[%c0_i32_50, %c0_i32_51] : memref<8x16xi32, #tpu.memory_space<vmem>> -> memref<1x16xi32, #tpu.memory_space<vmem>>
    %77 = tpu.memref_slice %arg9[%c0_i32_48] : memref<8x!tpu.dma_semaphore, #tpu.memory_space<semaphore_mem>> -> memref<1x!tpu.dma_semaphore, #tpu.memory_space<semaphore_mem>>
    %78 = tpu.memref_squeeze %77 : memref<1x!tpu.dma_semaphore, #tpu.memory_space<semaphore_mem>> -> memref<!tpu.dma_semaphore, #tpu.memory_space<semaphore_mem>>
    tpu.wait_dma2 semaphore(%78 : memref<!tpu.dma_semaphore, #tpu.memory_space<semaphore_mem>>) src(%75 : memref<1x16xi32, #tpu.memory_space<any>>) dst(%76 : memref<1x16xi32, #tpu.memory_space<vmem>>)
    %c1_i32_52 = arith.constant 1 : i32
    %c0_i32_53 = arith.constant 0 : i32
    %79 = tpu.memref_slice %arg3[%16, %c0_i32_53] : memref<128x16xi32, #tpu.memory_space<any>> -> memref<1x16xi32, #tpu.memory_space<any>>
    %c1_i32_54 = arith.constant 1 : i32
    %c0_i32_55 = arith.constant 0 : i32
    %80 = tpu.memref_slice %arg8[%c1_i32_54, %c0_i32_55] : memref<8x16xi32, #tpu.memory_space<vmem>> -> memref<1x16xi32, #tpu.memory_space<vmem>>
    %81 = tpu.memref_slice %arg9[%c1_i32_52] : memref<8x!tpu.dma_semaphore, #tpu.memory_space<semaphore_mem>> -> memref<1x!tpu.dma_semaphore, #tpu.memory_space<semaphore_mem>>
    %82 = tpu.memref_squeeze %81 : memref<1x!tpu.dma_semaphore, #tpu.memory_space<semaphore_mem>> -> memref<!tpu.dma_semaphore, #tpu.memory_space<semaphore_mem>>
    tpu.wait_dma2 semaphore(%82 : memref<!tpu.dma_semaphore, #tpu.memory_space<semaphore_mem>>) src(%79 : memref<1x16xi32, #tpu.memory_space<any>>) dst(%80 : memref<1x16xi32, #tpu.memory_space<vmem>>)
    %c2_i32_56 = arith.constant 2 : i32
    %c0_i32_57 = arith.constant 0 : i32
    %83 = tpu.memref_slice %arg3[%25, %c0_i32_57] : memref<128x16xi32, #tpu.memory_space<any>> -> memref<1x16xi32, #tpu.memory_space<any>>
    %c2_i32_58 = arith.constant 2 : i32
    %c0_i32_59 = arith.constant 0 : i32
    %84 = tpu.memref_slice %arg8[%c2_i32_58, %c0_i32_59] : memref<8x16xi32, #tpu.memory_space<vmem>> -> memref<1x16xi32, #tpu.memory_space<vmem>>
    %85 = tpu.memref_slice %arg9[%c2_i32_56] : memref<8x!tpu.dma_semaphore, #tpu.memory_space<semaphore_mem>> -> memref<1x!tpu.dma_semaphore, #tpu.memory_space<semaphore_mem>>
    %86 = tpu.memref_squeeze %85 : memref<1x!tpu.dma_semaphore, #tpu.memory_space<semaphore_mem>> -> memref<!tpu.dma_semaphore, #tpu.memory_space<semaphore_mem>>
    tpu.wait_dma2 semaphore(%86 : memref<!tpu.dma_semaphore, #tpu.memory_space<semaphore_mem>>) src(%83 : memref<1x16xi32, #tpu.memory_space<any>>) dst(%84 : memref<1x16xi32, #tpu.memory_space<vmem>>)
    %c3_i32_60 = arith.constant 3 : i32
    %c0_i32_61 = arith.constant 0 : i32
    %87 = tpu.memref_slice %arg3[%34, %c0_i32_61] : memref<128x16xi32, #tpu.memory_space<any>> -> memref<1x16xi32, #tpu.memory_space<any>>
    %c3_i32_62 = arith.constant 3 : i32
    %c0_i32_63 = arith.constant 0 : i32
    %88 = tpu.memref_slice %arg8[%c3_i32_62, %c0_i32_63] : memref<8x16xi32, #tpu.memory_space<vmem>> -> memref<1x16xi32, #tpu.memory_space<vmem>>
    %89 = tpu.memref_slice %arg9[%c3_i32_60] : memref<8x!tpu.dma_semaphore, #tpu.memory_space<semaphore_mem>> -> memref<1x!tpu.dma_semaphore, #tpu.memory_space<semaphore_mem>>
    %90 = tpu.memref_squeeze %89 : memref<1x!tpu.dma_semaphore, #tpu.memory_space<semaphore_mem>> -> memref<!tpu.dma_semaphore, #tpu.memory_space<semaphore_mem>>
    tpu.wait_dma2 semaphore(%90 : memref<!tpu.dma_semaphore, #tpu.memory_space<semaphore_mem>>) src(%87 : memref<1x16xi32, #tpu.memory_space<any>>) dst(%88 : memref<1x16xi32, #tpu.memory_space<vmem>>)
    %c4_i32_64 = arith.constant 4 : i32
    %c0_i32_65 = arith.constant 0 : i32
    %91 = tpu.memref_slice %arg3[%43, %c0_i32_65] : memref<128x16xi32, #tpu.memory_space<any>> -> memref<1x16xi32, #tpu.memory_space<any>>
    %c4_i32_66 = arith.constant 4 : i32
    %c0_i32_67 = arith.constant 0 : i32
    %92 = tpu.memref_slice %arg8[%c4_i32_66, %c0_i32_67] : memref<8x16xi32, #tpu.memory_space<vmem>> -> memref<1x16xi32, #tpu.memory_space<vmem>>
    %93 = tpu.memref_slice %arg9[%c4_i32_64] : memref<8x!tpu.dma_semaphore, #tpu.memory_space<semaphore_mem>> -> memref<1x!tpu.dma_semaphore, #tpu.memory_space<semaphore_mem>>
    %94 = tpu.memref_squeeze %93 : memref<1x!tpu.dma_semaphore, #tpu.memory_space<semaphore_mem>> -> memref<!tpu.dma_semaphore, #tpu.memory_space<semaphore_mem>>
    tpu.wait_dma2 semaphore(%94 : memref<!tpu.dma_semaphore, #tpu.memory_space<semaphore_mem>>) src(%91 : memref<1x16xi32, #tpu.memory_space<any>>) dst(%92 : memref<1x16xi32, #tpu.memory_space<vmem>>)
    %c5_i32_68 = arith.constant 5 : i32
    %c0_i32_69 = arith.constant 0 : i32
    %95 = tpu.memref_slice %arg3[%52, %c0_i32_69] : memref<128x16xi32, #tpu.memory_space<any>> -> memref<1x16xi32, #tpu.memory_space<any>>
    %c5_i32_70 = arith.constant 5 : i32
    %c0_i32_71 = arith.constant 0 : i32
    %96 = tpu.memref_slice %arg8[%c5_i32_70, %c0_i32_71] : memref<8x16xi32, #tpu.memory_space<vmem>> -> memref<1x16xi32, #tpu.memory_space<vmem>>
    %97 = tpu.memref_slice %arg9[%c5_i32_68] : memref<8x!tpu.dma_semaphore, #tpu.memory_space<semaphore_mem>> -> memref<1x!tpu.dma_semaphore, #tpu.memory_space<semaphore_mem>>
    %98 = tpu.memref_squeeze %97 : memref<1x!tpu.dma_semaphore, #tpu.memory_space<semaphore_mem>> -> memref<!tpu.dma_semaphore, #tpu.memory_space<semaphore_mem>>
    tpu.wait_dma2 semaphore(%98 : memref<!tpu.dma_semaphore, #tpu.memory_space<semaphore_mem>>) src(%95 : memref<1x16xi32, #tpu.memory_space<any>>) dst(%96 : memref<1x16xi32, #tpu.memory_space<vmem>>)
    %c6_i32_72 = arith.constant 6 : i32
    %c0_i32_73 = arith.constant 0 : i32
    %99 = tpu.memref_slice %arg3[%61, %c0_i32_73] : memref<128x16xi32, #tpu.memory_space<any>> -> memref<1x16xi32, #tpu.memory_space<any>>
    %c6_i32_74 = arith.constant 6 : i32
    %c0_i32_75 = arith.constant 0 : i32
    %100 = tpu.memref_slice %arg8[%c6_i32_74, %c0_i32_75] : memref<8x16xi32, #tpu.memory_space<vmem>> -> memref<1x16xi32, #tpu.memory_space<vmem>>
    %101 = tpu.memref_slice %arg9[%c6_i32_72] : memref<8x!tpu.dma_semaphore, #tpu.memory_space<semaphore_mem>> -> memref<1x!tpu.dma_semaphore, #tpu.memory_space<semaphore_mem>>
    %102 = tpu.memref_squeeze %101 : memref<1x!tpu.dma_semaphore, #tpu.memory_space<semaphore_mem>> -> memref<!tpu.dma_semaphore, #tpu.memory_space<semaphore_mem>>
    tpu.wait_dma2 semaphore(%102 : memref<!tpu.dma_semaphore, #tpu.memory_space<semaphore_mem>>) src(%99 : memref<1x16xi32, #tpu.memory_space<any>>) dst(%100 : memref<1x16xi32, #tpu.memory_space<vmem>>)
    %c7_i32_76 = arith.constant 7 : i32
    %c0_i32_77 = arith.constant 0 : i32
    %103 = tpu.memref_slice %arg3[%70, %c0_i32_77] : memref<128x16xi32, #tpu.memory_space<any>> -> memref<1x16xi32, #tpu.memory_space<any>>
    %c7_i32_78 = arith.constant 7 : i32
    %c0_i32_79 = arith.constant 0 : i32
    %104 = tpu.memref_slice %arg8[%c7_i32_78, %c0_i32_79] : memref<8x16xi32, #tpu.memory_space<vmem>> -> memref<1x16xi32, #tpu.memory_space<vmem>>
    %105 = tpu.memref_slice %arg9[%c7_i32_76] : memref<8x!tpu.dma_semaphore, #tpu.memory_space<semaphore_mem>> -> memref<1x!tpu.dma_semaphore, #tpu.memory_space<semaphore_mem>>
    %106 = tpu.memref_squeeze %105 : memref<1x!tpu.dma_semaphore, #tpu.memory_space<semaphore_mem>> -> memref<!tpu.dma_semaphore, #tpu.memory_space<semaphore_mem>>
    tpu.wait_dma2 semaphore(%106 : memref<!tpu.dma_semaphore, #tpu.memory_space<semaphore_mem>>) src(%103 : memref<1x16xi32, #tpu.memory_space<any>>) dst(%104 : memref<1x16xi32, #tpu.memory_space<vmem>>)
    %c0 = arith.constant 0 : index
    %c0_80 = arith.constant 0 : index
    %107 = vector.load %arg8[%c0, %c0_80] : memref<8x16xi32, #tpu.memory_space<vmem>>, vector<8x16xi32>
    %c16_i32 = arith.constant 16 : i32
    %108 = vector.broadcast %c16_i32 : i32 to vector<8x16xi32>
    %109 = arith.shli %107, %108 : vector<8x16xi32>
    %110 = tpu.bitcast %109 : vector<8x16xi32> -> vector<8x16xf32>
    %c-65536_i32 = arith.constant -65536 : i32
    %111 = vector.broadcast %c-65536_i32 : i32 to vector<8x16xi32>
    %112 = arith.andi %107, %111 : vector<8x16xi32>
    %113 = tpu.bitcast %112 : vector<8x16xi32> -> vector<8x16xf32>
    %114 = tpu.concatenate %110, %113 in 1 : vector<8x16xf32>, vector<8x16xf32> -> vector<8x32xf32>
    %c8_i32_81 = arith.constant 8 : i32
    %115 = arith.muli %arg1, %c8_i32_81 : i32
    %116 = tpu.assume_multiple %115, 8 : i32
    %117 = arith.index_cast %116 : i32 to index
    %c0_82 = arith.constant 0 : index
    %118 = vector.load %arg4[%117, %c0_82] : memref<8x32xf32, #tpu.memory_space<vmem>>, vector<8x32xf32>
    %119 = arith.addf %114, %118 : vector<8x32xf32>
    %cst = arith.constant dense<0.000000e+00> : vector<8xf32>
    %120 = vector.multi_reduction <add>, %119, %cst [1] : vector<8x32xf32> to vector<8xf32>
    %121 = vector.shape_cast %120 : vector<8xf32> to vector<8x1xf32>
    %cst_83 = arith.constant 3.200000e+01 : f32
    %122 = vector.broadcast %cst_83 : f32 to vector<8x1xf32>
    %123 = arith.divf %121, %122 : vector<8x1xf32>
    %124 = vector.broadcast %123 : vector<8x1xf32> to vector<8x32xf32>
    %125 = arith.subf %119, %124 : vector<8x32xf32>
    %126 = arith.mulf %125, %125 : vector<8x32xf32>
    %cst_84 = arith.constant dense<0.000000e+00> : vector<8xf32>
    %127 = vector.multi_reduction <add>, %126, %cst_84 [1] : vector<8x32xf32> to vector<8xf32>
    %128 = vector.shape_cast %127 : vector<8xf32> to vector<8x1xf32>
    %cst_85 = arith.constant 3.200000e+01 : f32
    %129 = vector.broadcast %cst_85 : f32 to vector<8x1xf32>
    %130 = arith.divf %128, %129 : vector<8x1xf32>
    %cst_86 = arith.constant 9.99999974E-6 : f32
    %131 = vector.broadcast %cst_86 : f32 to vector<8x1xf32>
    %132 = arith.addf %130, %131 : vector<8x1xf32>
    %133 = math.rsqrt %132 : vector<8x1xf32>
    %134 = vector.broadcast %133 : vector<8x1xf32> to vector<8x32xf32>
    %135 = arith.mulf %125, %134 : vector<8x32xf32>
    %c0_87 = arith.constant 0 : index
    %c0_88 = arith.constant 0 : index
    %136 = vector.load %arg5[%c0_87, %c0_88] : memref<1x32xf32, #tpu.memory_space<vmem>>, vector<1x32xf32>
    %137 = vector.broadcast %136 : vector<1x32xf32> to vector<8x32xf32>
    %138 = arith.mulf %135, %137 : vector<8x32xf32>
    %c0_89 = arith.constant 0 : index
    %c0_90 = arith.constant 0 : index
    %139 = vector.load %arg6[%c0_89, %c0_90] : memref<1x32xf32, #tpu.memory_space<vmem>>, vector<1x32xf32>
    %140 = vector.broadcast %139 : vector<1x32xf32> to vector<8x32xf32>
    %141 = arith.addf %138, %140 : vector<8x32xf32>
    %c0_91 = arith.constant 0 : index
    %c0_92 = arith.constant 0 : index
    %c0_93 = arith.constant 0 : index
    %142 = vector.load %arg7[%c0_91, %c0_92, %c0_93] : memref<1x8x32xf32, #tpu.memory_space<vmem>>, vector<1x8x32xf32>
    %143 = vector.shape_cast %142 : vector<1x8x32xf32> to vector<8x32xf32>
    %144 = vector.shape_cast %141 : vector<8x32xf32> to vector<1x8x32xf32>
    tpu.vector_store %arg7[%c0_91, %c0_92, %c0_93], %144 {strides = array<i32>} : memref<1x8x32xf32, #tpu.memory_space<vmem>>, vector<1x8x32xf32>,
    return
  }
  func.func @transform_1(%arg0: i32, %arg1: i32, %arg2: memref<16xi32, #tpu.memory_space<smem>>) -> (i32, i32) {
    %c0_i32 = arith.constant 0 : i32
    %c0_i32_0 = arith.constant 0 : i32
    %c0_i32_1 = arith.constant 0 : i32
    return %c0_i32, %c0_i32_0 : i32, i32
  }
  func.func @transform_2(%arg0: i32, %arg1: i32, %arg2: memref<16xi32, #tpu.memory_space<smem>>) -> (i32, i32) {
    %c0_i32 = arith.constant 0 : i32
    %c0_i32_0 = arith.constant 0 : i32
    %c0_i32_1 = arith.constant 0 : i32
    return %c0_i32, %c0_i32_0 : i32, i32
  }
  func.func @transform_3(%arg0: i32, %arg1: i32, %arg2: memref<16xi32, #tpu.memory_space<smem>>) -> (i32, i32) {
    %c0_i32 = arith.constant 0 : i32
    %c0_i32_0 = arith.constant 0 : i32
    %c0_i32_1 = arith.constant 0 : i32
    return %c0_i32, %c0_i32_0 : i32, i32
  }
  func.func @transform_4(%arg0: i32, %arg1: i32, %arg2: memref<16xi32, #tpu.memory_space<smem>>) -> (i32, i32, i32) {
    %c0_i32 = arith.constant 0 : i32
    %c0_i32_0 = arith.constant 0 : i32
    return %arg0, %arg1, %c0_i32 : i32, i32, i32
  }
}

</mosaic_0001>

<llo_original>
// kernel: tpu_custom_call.1
$region0: #{tpu_custom_call.1}
  #allocation0 [shape = 'u32[]', space=smem, size = 0x4, offset = 0x4, fixed_abs, tag = 'smem constant byte address 0x4 - core index']
  #allocation1 [shape = 'u32[144,128]{1,0:T(1,128)}', space=vmem, size = 0x12000, scoped, tag = 'internal scratch']
  #allocation2 [shape = 's32[8,16]{1,0:T(8,128)}', space=vmem, size = 0x1000, scoped, tag = 'scratch operand']
  #allocation3 [shape = 's32[8]{0}', space=sflag, size = 0x20, scoped, tag = 'scratch operand']
  #allocation4 [shape = 's32[1]{0}', space=sflag, size = 0x4, scoped, tag = 'scoped memory for tpu_custom_call.1']
  #allocation5 [shape = 'u8[512]{0}', space=smem, size = 0x200, scoped, tag = 'prefetched SMEM operand 0']
  #allocation8 [shape = 's32[]', space=sflag, size = 0x4, offset = 0, fixed_abs, tag = 'sflag constant byte address 0x0 - dummy sync flag']
  #allocation9 [shape = 's32[]', space=sflag, size = 0x4, offset = 0, fixed_abs, tag = 'sflag constant byte address 0x0 - dummy sync flag']
  #allocation10 [shape = 's32[]', space=sflag, size = 0x4, offset = 0, fixed_abs, tag = 'sflag constant byte address 0x0 - dummy sync flag']
  #allocation11 [shape = 's32[]', space=sflag, size = 0x4, offset = 0, fixed_abs, tag = 'sflag constant byte address 0x0 - dummy sync flag']
  #allocation12 [shape = 's32[]', space=sflag, size = 0x4, offset = 0, fixed_abs, tag = 'sflag constant byte address 0x0 - dummy sync flag']
  #allocation13 [shape = 's32[]', space=sflag, size = 0x4, offset = 0, fixed_abs, tag = 'sflag constant byte address 0x0 - dummy sync flag']
  #allocation14 [shape = 's32[]', space=sflag, size = 0x4, offset = 0, fixed_abs, tag = 'sflag constant byte address 0x0 - dummy sync flag']
  #allocation15 [shape = 's32[]', space=sflag, size = 0x4, offset = 0, fixed_abs, tag = 'sflag constant byte address 0x0 - dummy sync flag']
  %s0 = inlined_call_operand.vmem [shape: s32[16], index: 0, kind: input, shape index: {}]
  %s1 = inlined_call_operand.vmem [shape: u32[128,16], index: 1, kind: input, shape index: {}]
  %s2 = inlined_call_operand.vmem [shape: f32[8,32], index: 2, kind: input, shape index: {}]
  %s3 = inlined_call_operand.vmem [shape: f32[1,32], index: 3, kind: input, shape index: {}]
  %s4 = inlined_call_operand.vmem [shape: f32[1,32], index: 4, kind: input, shape index: {}]
  %s5 = inlined_call_operand.hbm [shape: f32[2,8,32], index: 5, kind: output, shape index: {}]
  %s6 = sld [smem:[#allocation0]]
  $region285: #{tpu_custom_call.1} parent=0
    _
  %s8 = ssub.s32 1, %s6
  %s9 = scalar_select 0, %s8, %s6
  %s10 = sshll.u32 %s0, 4
  %s11 = int_to_ptr.vmem [resolvable:$true] %s10
  %13 = dma.vmem_to_smem %s11, 16, [#allocation5], [#allocation4]
  %14 = dma.done [#allocation4], 16
  %15 = sfence
  $region1: #{tpu_custom_call.1} parent=0
    #allocation6 [shape = 'u8[8192]{0}', space=vmem, size = 0x2000, scoped, tag = 'output window, operand 0']
    #allocation7 [shape = 's32[2]{0}', space=sflag, size = 0x8, scoped, tag = 'scoped memory for tpu_custom_call.1']
    %16 = vsyncpa [#allocation7], 0
    %s17 = scalar_lea.sflag [#allocation7], 1
    %18 = vsyncpa %s17, 0
    loop: start=0, step=1, limit=4
    $region2: #{tpu_custom_call.1} parent=1 // loop_pre_header
      _
    $region3: #{tpu_custom_call.1} parent=1 // loop_header
      %s20 = sphi 0, %s24
      %p21 = scmp.ge.s32.totalorder %s20, 4
      %s27 = sphi 0, %s39
      %s28 = sphi 0, %s35
      %s29 = sphi 0, %s27
      %s30 = sphi 0, %s28
      %s31 = sphi 0, %s29
      %s32 = sphi 0, %s30
      %s40 = sphi 0, %s40
      %s42 = sphi 0, %s40
      %s43 = sphi 0, %s42
      %s57 = sphi 0, %s43
      %s61 = sphi 0, %s61
      %s63 = sphi 0, %s61
      %s64 = sphi 0, %s63
      %s78 = sphi 0, %s64
      %s82 = sphi 0, %s82
      %s84 = sphi 0, %s82
      %s85 = sphi 0, %s84
      %s99 = sphi 0, %s85
      %s107 = sphi 0, %s109
      %s110 = sphi 0, %s107
      %s111 = sphi 0, %s110
      %s127 = sphi 0, %s111
    $region4: #{tpu_custom_call.1} parent=1 // loop_header_branch
      %23 = sbr.rel (%p21) target = $region8
    $region5: #{tpu_custom_call.1} parent=1 // loop_body
      %s25 = ssub.s32 %s20, 1
      %s26 = ssub.s32 %s20, 2
      %s33 = sadd.s32 1, %s28
      %p34 = scmp.ge.s32.totalorder %s33, 1
      %s35 = scalar_select %p34, 0, %s33
      %s36 = sadd.s32 1, %s27
      %s37 = scalar_select %p34, %s36, %s27
      %p38 = scmp.ge.s32.totalorder %s37, 2
      %s39 = scalar_select %p38, 0, %s37
      %s41 = sadd.s32 %s40, 1
      %p44 = scmp.eq.s32.totalorder %s20, 1
      %p45 = scmp.ne.s32.totalorder %s40, %s42
      %p46 = scmp.eq.s32.totalorder %s20, 0
      %p47 = por %p45, %p46
      %p48 = scmp.ne.s32.totalorder %s40, %s42
      %p49 = scmp.eq.s32.totalorder %s25, 1
      %p50 = por %p48, %p49
      %p51 = scmp.ne.s32.totalorder %s42, %s43
      %p52 = scmp.eq.s32.totalorder %s25, 0
      %p53 = por %p51, %p52
      %p54 = scmp.ne.s32.totalorder %s42, %s43
      %p55 = scmp.eq.s32.totalorder %s26, 1
      %p56 = por %p54, %p55
      %p58 = scmp.ne.s32.totalorder %s43, %s57
      %p59 = scmp.eq.s32.totalorder %s26, 0
      %p60 = por %p58, %p59
      %s62 = sadd.s32 %s61, 1
      %p65 = scmp.eq.s32.totalorder %s20, 1
      %p66 = scmp.ne.s32.totalorder %s61, %s63
      %p67 = scmp.eq.s32.totalorder %s20, 0
      %p68 = por %p66, %p67
      %p69 = scmp.ne.s32.totalorder %s61, %s63
      %p70 = scmp.eq.s32.totalorder %s25, 1
      %p71 = por %p69, %p70
      %p72 = scmp.ne.s32.totalorder %s63, %s64
      %p73 = scmp.eq.s32.totalorder %s25, 0
      %p74 = por %p72, %p73
      %p75 = scmp.ne.s32.totalorder %s63, %s64
      %p76 = scmp.eq.s32.totalorder %s26, 1
      %p77 = por %p75, %p76
      %p79 = scmp.ne.s32.totalorder %s64, %s78
      %p80 = scmp.eq.s32.totalorder %s26, 0
      %p81 = por %p79, %p80
      %s83 = sadd.s32 %s82, 1
      %p86 = scmp.eq.s32.totalorder %s20, 1
      %p87 = scmp.ne.s32.totalorder %s82, %s84
      %p88 = scmp.eq.s32.totalorder %s20, 0
      %p89 = por %p87, %p88
      %p90 = scmp.ne.s32.totalorder %s82, %s84
      %p91 = scmp.eq.s32.totalorder %s25, 1
      %p92 = por %p90, %p91
      %p93 = scmp.ne.s32.totalorder %s84, %s85
      %p94 = scmp.eq.s32.totalorder %s25, 0
      %p95 = por %p93, %p94
      %p96 = scmp.ne.s32.totalorder %s84, %s85
      %p97 = scmp.eq.s32.totalorder %s26, 1
      %p98 = por %p96, %p97
      %p100 = scmp.ne.s32.totalorder %s85, %s99
      %p101 = scmp.eq.s32.totalorder %s26, 0
      %p102 = por %p100, %p101
      %s103 = ssub.s32 %s27, %s39
      %s104 = ssub.s32 %s28, %s35
      %s105 = sor.u32 %s103, %s104
      %p106 = scmp.eq.s32.totalorder %s105, 0
      %s108 = sadd.s32 %s107, 1
      %s109 = scalar_select %p106, %s107, %s108
      %p112 = pneg %p106
      %p113 = scmp.eq.s32.totalorder %s20, 1
      %p114 = por %p112, %p113
      %p115 = scmp.ne.s32.totalorder %s107, %s110
      %p116 = scmp.eq.s32.totalorder %s20, 0
      %p117 = por %p115, %p116
      %p118 = scmp.ne.s32.totalorder %s107, %s110
      %p119 = scmp.eq.s32.totalorder %s25, 1
      %p120 = por %p118, %p119
      %p121 = scmp.ne.s32.totalorder %s110, %s111
      %p122 = scmp.eq.s32.totalorder %s25, 0
      %p123 = por %p121, %p122
      %p124 = scmp.ne.s32.totalorder %s110, %s111
      %p125 = scmp.eq.s32.totalorder %s26, 1
      %p126 = por %p124, %p125
      %p128 = scmp.ne.s32.totalorder %s111, %s127
      %p129 = scmp.eq.s32.totalorder %s26, 0
      %p130 = por %p128, %p129
      %p131 = scmp.le.s32.totalorder 1, %s20
      %p132 = scmp.lt.s32.totalorder %s20, 3
      %p133 = pnand %p131, %p132
      %p134 = pneg %p133
      // Predicated region
      $region9: #{tpu_custom_call.1} parent=5 // pred_check
        _
      $region10: #{tpu_custom_call.1} parent=5 // pred_check_branch
        %136 = sbr.rel (%p133) target = $region12
      $region11: #{tpu_custom_call.1} parent=5 // pred_region
        %s137 = ssub.s32 %s20, 1
        // Predicated region
        $region13: #{tpu_custom_call.1} parent=11 // pred_check
          %p138 = pneg %p53
        $region14: #{tpu_custom_call.1} parent=11 // pred_check_branch
          %140 = sbr.rel (%p138) target = $region16
        $region15: #{tpu_custom_call.1} parent=11 // pred_region
          _
        $region16: #{tpu_custom_call.1} parent=11 // pred_fallthru
          _
        // Predicated region
        $region17: #{tpu_custom_call.1} parent=11 // pred_check
          %p141 = pneg %p74
        $region18: #{tpu_custom_call.1} parent=11 // pred_check_branch
          %143 = sbr.rel (%p141) target = $region20
        $region19: #{tpu_custom_call.1} parent=11 // pred_region
          _
        $region20: #{tpu_custom_call.1} parent=11 // pred_fallthru
          _
        // Predicated region
        $region21: #{tpu_custom_call.1} parent=11 // pred_check
          %p144 = pneg %p95
        $region22: #{tpu_custom_call.1} parent=11 // pred_check_branch
          %146 = sbr.rel (%p144) target = $region24
        $region23: #{tpu_custom_call.1} parent=11 // pred_region
          _
        $region24: #{tpu_custom_call.1} parent=11 // pred_fallthru
          _
      $region12: #{tpu_custom_call.1} parent=5 // pred_fallthru
        _
      %p147 = scmp.lt.s32.totalorder %s20, 2
      // Predicated region
      $region25: #{tpu_custom_call.1} parent=5 // pred_check
        %p148 = pneg %p147
      $region26: #{tpu_custom_call.1} parent=5 // pred_check_branch
        %150 = sbr.rel (%p148) target = $region28
      $region27: #{tpu_custom_call.1} parent=5 // pred_region
        _
      $region28: #{tpu_custom_call.1} parent=5 // pred_fallthru
        _
      %p151 = scmp.le.s32.totalorder 1, %s20
      %p152 = scmp.lt.s32.totalorder %s20, 3
      %p153 = pnand %p151, %p152
      %p154 = pneg %p153
      // Predicated region
      $region29: #{tpu_custom_call.1} parent=5 // pred_check
        _
      $region30: #{tpu_custom_call.1} parent=5 // pred_check_branch
        %156 = sbr.rel (%p153) target = $region32
      $region31: #{tpu_custom_call.1} parent=5 // pred_region
        %s157 = ssub.s32 %s20, 1
        %p158 = pneg %p53
        %p159 = pneg %p50
        %p160 = pneg %p74
        %p161 = pneg %p71
        %p162 = pneg %p95
        %p163 = pneg %p92
        %p164 = pneg %p123
        %p165 = pneg %p120
        %s166 = sand.u32 %s110, 1
        %s167 = scalar_lea.sflag [#allocation7], %s166
        %s168 = sand.u32 %s110, 1
        %s169 = smul.addr %s168, 8
        %s170 = scalar_lea.vmem [#allocation6], %s169
        %s171 = smul.u32 %s29, 8
        %s172 = smul.u32 %s30, 8
        %s173 = sadd.s32 %s171, %s172
        %s174 = sld [smem:[#allocation5 + %s173]]
        %p175 = scmp.gt.s32.totalorder %s174, 0
        %s176 = scalar_select %p175, %s174, 0
        %p177 = scmp.lt.s32.totalorder %s176, 127
        %s178 = scalar_select %p177, %s176, 127
        %s179 = scalar_lea.vmem %s1, %s178
        %p181 = scmp.lt.u32.totalorder 1, 8
        %p182 = pneg %p181
        // Predicated region
        $region33: #{tpu_custom_call.1} parent=31 // pred_check
          _
        $region34: #{tpu_custom_call.1} parent=31 // pred_check_branch
          %184 = sbr.rel (%p181) target = $region36
        $region35: #{tpu_custom_call.1} parent=31 // pred_region
          %s200 = sand.u32 1, 7
          %p201 = scmp.eq.s32.totalorder %s200, 0
          %p202 = pneg %p201
          // Predicated region
          $region48: #{tpu_custom_call.1} parent=35 // pred_check
            _
          $region49: #{tpu_custom_call.1} parent=35 // pred_check_branch
            %204 = sbr.rel (%p201) target = $region51
          $region50: #{tpu_custom_call.1} parent=35 // pred_region
            %s205 = sand.u32 1, 7
            %s206 = ssub.s32 1, %s205
            %s207 = scalar_lea.vmem %s179, %s206
            %s208 = ssub.s32 1, %s205
            %s209 = scalar_lea.vmem [#allocation2], %s208
            %s210 = sshll.u32 1, %s205
            %s211 = ssub.s32 %s210, 1
            loop: start=0, step=1, limit=1
            $region52: #{tpu_custom_call.1} parent=50 // loop_pre_header
              _
            $region53: #{tpu_custom_call.1} parent=50 // loop_header
              %s213 = sphi 0, %s217
              %p214 = scmp.ge.s32.totalorder %s213, 1
              %s218 = sphi %s207, %s207
              %s219 = sphi %s209, %s209
            $region54: #{tpu_custom_call.1} parent=50 // loop_header_branch
              %216 = sbr.rel (%p214) target = $region58
            $region55: #{tpu_custom_call.1} parent=50 // loop_body
              %v220 = vld [vmem:[%s218] sm:%s211]
              %221 = vst [vmem:[%s219] sm:%s211] %v220
            $region56: #{tpu_custom_call.1} parent=50 // loop_footer
              %s217 = sadd.s32 1, %s213
            $region57: #{tpu_custom_call.1} parent=50 // loop_footer_branch
              %212 = sbr.rel target = $region53
            $region58: #{tpu_custom_call.1} parent=50 // loop_exit
              _
          $region51: #{tpu_custom_call.1} parent=35 // pred_fallthru
            _
        $region36: #{tpu_custom_call.1} parent=31 // pred_fallthru
          _
        // Predicated region
        $region37: #{tpu_custom_call.1} parent=31 // pred_check
          %p185 = pneg %p181
        $region38: #{tpu_custom_call.1} parent=31 // pred_check_branch
          %187 = sbr.rel (%p185) target = $region40
        $region39: #{tpu_custom_call.1} parent=31 // pred_region
          %s188 = sshll.u32 1, 1
          %s189 = ssub.s32 %s188, 1
          loop: start=0, step=1, limit=1
          $region41: #{tpu_custom_call.1} parent=39 // loop_pre_header
            _
          $region42: #{tpu_custom_call.1} parent=39 // loop_header
            %s191 = sphi 0, %s195
            %p192 = scmp.ge.s32.totalorder %s191, 1
            %s196 = sphi %s179, %s179
            %s197 = sphi [#allocation2], [#allocation2]
          $region43: #{tpu_custom_call.1} parent=39 // loop_header_branch
            %194 = sbr.rel (%p192) target = $region47
          $region44: #{tpu_custom_call.1} parent=39 // loop_body
            %v198 = vld [vmem:[%s196] sm:%s189]
            %199 = vst [vmem:[%s197] sm:%s189] %v198
          $region45: #{tpu_custom_call.1} parent=39 // loop_footer
            %s195 = sadd.s32 1, %s191
          $region46: #{tpu_custom_call.1} parent=39 // loop_footer_branch
            %190 = sbr.rel target = $region42
          $region47: #{tpu_custom_call.1} parent=39 // loop_exit
            _
        $region40: #{tpu_custom_call.1} parent=31 // pred_fallthru
          _
        // Predicated region
        $region59: #{tpu_custom_call.1} parent=31 // pred_check
          _
        $region60: #{tpu_custom_call.1} parent=31 // pred_check_branch
          %224 = sbr.rel (0) target = $region62
        $region61: #{tpu_custom_call.1} parent=31 // pred_region
          %225 = vsyncadd [#allocation3], 16
        $region62: #{tpu_custom_call.1} parent=31 // pred_fallthru
          _
        %s226 = sadd.s32 %s173, 1
        %s227 = sld [smem:[#allocation5 + %s226]]
        %p228 = scmp.gt.s32.totalorder %s227, 0
        %s229 = scalar_select %p228, %s227, 0
        %p230 = scmp.lt.s32.totalorder %s229, 127
        %s231 = scalar_select %p230, %s229, 127
        %s232 = scalar_lea.vmem %s1, %s231
        %s233 = scalar_lea.vmem [#allocation2], 1
        %s234 = scalar_lea.sflag [#allocation3], 1
        %p236 = scmp.lt.u32.totalorder 1, 8
        %p237 = pneg %p236
        // Predicated region
        $region63: #{tpu_custom_call.1} parent=31 // pred_check
          _
        $region64: #{tpu_custom_call.1} parent=31 // pred_check_branch
          %239 = sbr.rel (%p236) target = $region66
        $region65: #{tpu_custom_call.1} parent=31 // pred_region
          %s255 = sand.u32 1, 7
          %p256 = scmp.eq.s32.totalorder %s255, 0
          %p257 = pneg %p256
          // Predicated region
          $region78: #{tpu_custom_call.1} parent=65 // pred_check
            _
          $region79: #{tpu_custom_call.1} parent=65 // pred_check_branch
            %259 = sbr.rel (%p256) target = $region81
          $region80: #{tpu_custom_call.1} parent=65 // pred_region
            %s260 = sand.u32 1, 7
            %s261 = ssub.s32 1, %s260
            %s262 = scalar_lea.vmem %s232, %s261
            %s263 = ssub.s32 1, %s260
            %s264 = scalar_lea.vmem %s233, %s263 [#allocation2]
            %s265 = sshll.u32 1, %s260
            %s266 = ssub.s32 %s265, 1
            loop: start=0, step=1, limit=1
            $region82: #{tpu_custom_call.1} parent=80 // loop_pre_header
              _
            $region83: #{tpu_custom_call.1} parent=80 // loop_header
              %s268 = sphi 0, %s272
              %p269 = scmp.ge.s32.totalorder %s268, 1
              %s273 = sphi %s262, %s262
              %s274 = sphi %s264, %s264
            $region84: #{tpu_custom_call.1} parent=80 // loop_header_branch
              %271 = sbr.rel (%p269) target = $region88
            $region85: #{tpu_custom_call.1} parent=80 // loop_body
              %v275 = vld [vmem:[%s273] sm:%s266]
              %276 = vst [vmem:[%s274] sm:%s266] %v275
            $region86: #{tpu_custom_call.1} parent=80 // loop_footer
              %s272 = sadd.s32 1, %s268
            $region87: #{tpu_custom_call.1} parent=80 // loop_footer_branch
              %267 = sbr.rel target = $region83
            $region88: #{tpu_custom_call.1} parent=80 // loop_exit
              _
          $region81: #{tpu_custom_call.1} parent=65 // pred_fallthru
            _
        $region66: #{tpu_custom_call.1} parent=31 // pred_fallthru
          _
        // Predicated region
        $region67: #{tpu_custom_call.1} parent=31 // pred_check
          %p240 = pneg %p236
        $region68: #{tpu_custom_call.1} parent=31 // pred_check_branch
          %242 = sbr.rel (%p240) target = $region70
        $region69: #{tpu_custom_call.1} parent=31 // pred_region
          %s243 = sshll.u32 1, 1
          %s244 = ssub.s32 %s243, 1
          loop: start=0, step=1, limit=1
          $region71: #{tpu_custom_call.1} parent=69 // loop_pre_header
            _
          $region72: #{tpu_custom_call.1} parent=69 // loop_header
            %s246 = sphi 0, %s250
            %p247 = scmp.ge.s32.totalorder %s246, 1
            %s251 = sphi %s232, %s232
            %s252 = sphi %s233, %s233
          $region73: #{tpu_custom_call.1} parent=69 // loop_header_branch
            %249 = sbr.rel (%p247) target = $region77
          $region74: #{tpu_custom_call.1} parent=69 // loop_body
            %v253 = vld [vmem:[%s251] sm:%s244]
            %254 = vst [vmem:[%s252] sm:%s244] %v253
          $region75: #{tpu_custom_call.1} parent=69 // loop_footer
            %s250 = sadd.s32 1, %s246
          $region76: #{tpu_custom_call.1} parent=69 // loop_footer_branch
            %245 = sbr.rel target = $region72
          $region77: #{tpu_custom_call.1} parent=69 // loop_exit
            _
        $region70: #{tpu_custom_call.1} parent=31 // pred_fallthru
          _
        // Predicated region
        $region89: #{tpu_custom_call.1} parent=31 // pred_check
          _
        $region90: #{tpu_custom_call.1} parent=31 // pred_check_branch
          %279 = sbr.rel (0) target = $region92
        $region91: #{tpu_custom_call.1} parent=31 // pred_region
          %280 = vsyncadd %s234, 16
        $region92: #{tpu_custom_call.1} parent=31 // pred_fallthru
          _
        %s281 = sadd.s32 %s173, 2
        %s282 = sld [smem:[#allocation5 + %s281]]
        %p283 = scmp.gt.s32.totalorder %s282, 0
        %s284 = scalar_select %p283, %s282, 0
        %p285 = scmp.lt.s32.totalorder %s284, 127
        %s286 = scalar_select %p285, %s284, 127
        %s287 = scalar_lea.vmem %s1, %s286
        %s288 = scalar_lea.vmem [#allocation2], 2
        %s289 = scalar_lea.sflag [#allocation3], 2
        %p291 = scmp.lt.u32.totalorder 1, 8
        %p292 = pneg %p291
        // Predicated region
        $region93: #{tpu_custom_call.1} parent=31 // pred_check
          _
        $region94: #{tpu_custom_call.1} parent=31 // pred_check_branch
          %294 = sbr.rel (%p291) target = $region96
        $region95: #{tpu_custom_call.1} parent=31 // pred_region
          %s310 = sand.u32 1, 7
          %p311 = scmp.eq.s32.totalorder %s310, 0
          %p312 = pneg %p311
          // Predicated region
          $region108: #{tpu_custom_call.1} parent=95 // pred_check
            _
          $region109: #{tpu_custom_call.1} parent=95 // pred_check_branch
            %314 = sbr.rel (%p311) target = $region111
          $region110: #{tpu_custom_call.1} parent=95 // pred_region
            %s315 = sand.u32 1, 7
            %s316 = ssub.s32 1, %s315
            %s317 = scalar_lea.vmem %s287, %s316
            %s318 = ssub.s32 1, %s315
            %s319 = scalar_lea.vmem %s288, %s318 [#allocation2]
            %s320 = sshll.u32 1, %s315
            %s321 = ssub.s32 %s320, 1
            loop: start=0, step=1, limit=1
            $region112: #{tpu_custom_call.1} parent=110 // loop_pre_header
              _
            $region113: #{tpu_custom_call.1} parent=110 // loop_header
              %s323 = sphi 0, %s327
              %p324 = scmp.ge.s32.totalorder %s323, 1
              %s328 = sphi %s317, %s317
              %s329 = sphi %s319, %s319
            $region114: #{tpu_custom_call.1} parent=110 // loop_header_branch
              %326 = sbr.rel (%p324) target = $region118
            $region115: #{tpu_custom_call.1} parent=110 // loop_body
              %v330 = vld [vmem:[%s328] sm:%s321]
              %331 = vst [vmem:[%s329] sm:%s321] %v330
            $region116: #{tpu_custom_call.1} parent=110 // loop_footer
              %s327 = sadd.s32 1, %s323
            $region117: #{tpu_custom_call.1} parent=110 // loop_footer_branch
              %322 = sbr.rel target = $region113
            $region118: #{tpu_custom_call.1} parent=110 // loop_exit
              _
          $region111: #{tpu_custom_call.1} parent=95 // pred_fallthru
            _
        $region96: #{tpu_custom_call.1} parent=31 // pred_fallthru
          _
        // Predicated region
        $region97: #{tpu_custom_call.1} parent=31 // pred_check
          %p295 = pneg %p291
        $region98: #{tpu_custom_call.1} parent=31 // pred_check_branch
          %297 = sbr.rel (%p295) target = $region100
        $region99: #{tpu_custom_call.1} parent=31 // pred_region
          %s298 = sshll.u32 1, 1
          %s299 = ssub.s32 %s298, 1
          loop: start=0, step=1, limit=1
          $region101: #{tpu_custom_call.1} parent=99 // loop_pre_header
            _
          $region102: #{tpu_custom_call.1} parent=99 // loop_header
            %s301 = sphi 0, %s305
            %p302 = scmp.ge.s32.totalorder %s301, 1
            %s306 = sphi %s287, %s287
            %s307 = sphi %s288, %s288
          $region103: #{tpu_custom_call.1} parent=99 // loop_header_branch
            %304 = sbr.rel (%p302) target = $region107
          $region104: #{tpu_custom_call.1} parent=99 // loop_body
            %v308 = vld [vmem:[%s306] sm:%s299]
            %309 = vst [vmem:[%s307] sm:%s299] %v308
          $region105: #{tpu_custom_call.1} parent=99 // loop_footer
            %s305 = sadd.s32 1, %s301
          $region106: #{tpu_custom_call.1} parent=99 // loop_footer_branch
            %300 = sbr.rel target = $region102
          $region107: #{tpu_custom_call.1} parent=99 // loop_exit
            _
        $region100: #{tpu_custom_call.1} parent=31 // pred_fallthru
          _
        // Predicated region
        $region119: #{tpu_custom_call.1} parent=31 // pred_check
          _
        $region120: #{tpu_custom_call.1} parent=31 // pred_check_branch
          %334 = sbr.rel (0) target = $region122
        $region121: #{tpu_custom_call.1} parent=31 // pred_region
          %335 = vsyncadd %s289, 16
        $region122: #{tpu_custom_call.1} parent=31 // pred_fallthru
          _
        %s336 = sadd.s32 %s173, 3
        %s337 = sld [smem:[#allocation5 + %s336]]
        %p338 = scmp.gt.s32.totalorder %s337, 0
        %s339 = scalar_select %p338, %s337, 0
        %p340 = scmp.lt.s32.totalorder %s339, 127
        %s341 = scalar_select %p340, %s339, 127
        %s342 = scalar_lea.vmem %s1, %s341
        %s343 = scalar_lea.vmem [#allocation2], 3
        %s344 = scalar_lea.sflag [#allocation3], 3
        %p346 = scmp.lt.u32.totalorder 1, 8
        %p347 = pneg %p346
        // Predicated region
        $region123: #{tpu_custom_call.1} parent=31 // pred_check
          _
        $region124: #{tpu_custom_call.1} parent=31 // pred_check_branch
          %349 = sbr.rel (%p346) target = $region126
        $region125: #{tpu_custom_call.1} parent=31 // pred_region
          %s365 = sand.u32 1, 7
          %p366 = scmp.eq.s32.totalorder %s365, 0
          %p367 = pneg %p366
          // Predicated region
          $region138: #{tpu_custom_call.1} parent=125 // pred_check
            _
          $region139: #{tpu_custom_call.1} parent=125 // pred_check_branch
            %369 = sbr.rel (%p366) target = $region141
          $region140: #{tpu_custom_call.1} parent=125 // pred_region
            %s370 = sand.u32 1, 7
            %s371 = ssub.s32 1, %s370
            %s372 = scalar_lea.vmem %s342, %s371
            %s373 = ssub.s32 1, %s370
            %s374 = scalar_lea.vmem %s343, %s373 [#allocation2]
            %s375 = sshll.u32 1, %s370
            %s376 = ssub.s32 %s375, 1
            loop: start=0, step=1, limit=1
            $region142: #{tpu_custom_call.1} parent=140 // loop_pre_header
              _
            $region143: #{tpu_custom_call.1} parent=140 // loop_header
              %s378 = sphi 0, %s382
              %p379 = scmp.ge.s32.totalorder %s378, 1
              %s383 = sphi %s372, %s372
              %s384 = sphi %s374, %s374
            $region144: #{tpu_custom_call.1} parent=140 // loop_header_branch
              %381 = sbr.rel (%p379) target = $region148
            $region145: #{tpu_custom_call.1} parent=140 // loop_body
              %v385 = vld [vmem:[%s383] sm:%s376]
              %386 = vst [vmem:[%s384] sm:%s376] %v385
            $region146: #{tpu_custom_call.1} parent=140 // loop_footer
              %s382 = sadd.s32 1, %s378
            $region147: #{tpu_custom_call.1} parent=140 // loop_footer_branch
              %377 = sbr.rel target = $region143
            $region148: #{tpu_custom_call.1} parent=140 // loop_exit
              _
          $region141: #{tpu_custom_call.1} parent=125 // pred_fallthru
            _
        $region126: #{tpu_custom_call.1} parent=31 // pred_fallthru
          _
        // Predicated region
        $region127: #{tpu_custom_call.1} parent=31 // pred_check
          %p350 = pneg %p346
        $region128: #{tpu_custom_call.1} parent=31 // pred_check_branch
          %352 = sbr.rel (%p350) target = $region130
        $region129: #{tpu_custom_call.1} parent=31 // pred_region
          %s353 = sshll.u32 1, 1
          %s354 = ssub.s32 %s353, 1
          loop: start=0, step=1, limit=1
          $region131: #{tpu_custom_call.1} parent=129 // loop_pre_header
            _
          $region132: #{tpu_custom_call.1} parent=129 // loop_header
            %s356 = sphi 0, %s360
            %p357 = scmp.ge.s32.totalorder %s356, 1
            %s361 = sphi %s342, %s342
            %s362 = sphi %s343, %s343
          $region133: #{tpu_custom_call.1} parent=129 // loop_header_branch
            %359 = sbr.rel (%p357) target = $region137
          $region134: #{tpu_custom_call.1} parent=129 // loop_body
            %v363 = vld [vmem:[%s361] sm:%s354]
            %364 = vst [vmem:[%s362] sm:%s354] %v363
          $region135: #{tpu_custom_call.1} parent=129 // loop_footer
            %s360 = sadd.s32 1, %s356
          $region136: #{tpu_custom_call.1} parent=129 // loop_footer_branch
            %355 = sbr.rel target = $region132
          $region137: #{tpu_custom_call.1} parent=129 // loop_exit
            _
        $region130: #{tpu_custom_call.1} parent=31 // pred_fallthru
          _
        // Predicated region
        $region149: #{tpu_custom_call.1} parent=31 // pred_check
          _
        $region150: #{tpu_custom_call.1} parent=31 // pred_check_branch
          %389 = sbr.rel (0) target = $region152
        $region151: #{tpu_custom_call.1} parent=31 // pred_region
          %390 = vsyncadd %s344, 16
        $region152: #{tpu_custom_call.1} parent=31 // pred_fallthru
          _
        %s391 = sadd.s32 %s173, 4
        %s392 = sld [smem:[#allocation5 + %s391]]
        %p393 = scmp.gt.s32.totalorder %s392, 0
        %s394 = scalar_select %p393, %s392, 0
        %p395 = scmp.lt.s32.totalorder %s394, 127
        %s396 = scalar_select %p395, %s394, 127
        %s397 = scalar_lea.vmem %s1, %s396
        %s398 = scalar_lea.vmem [#allocation2], 4
        %s399 = scalar_lea.sflag [#allocation3], 4
        %p401 = scmp.lt.u32.totalorder 1, 8
        %p402 = pneg %p401
        // Predicated region
        $region153: #{tpu_custom_call.1} parent=31 // pred_check
          _
        $region154: #{tpu_custom_call.1} parent=31 // pred_check_branch
          %404 = sbr.rel (%p401) target = $region156
        $region155: #{tpu_custom_call.1} parent=31 // pred_region
          %s420 = sand.u32 1, 7
          %p421 = scmp.eq.s32.totalorder %s420, 0
          %p422 = pneg %p421
          // Predicated region
          $region168: #{tpu_custom_call.1} parent=155 // pred_check
            _
          $region169: #{tpu_custom_call.1} parent=155 // pred_check_branch
            %424 = sbr.rel (%p421) target = $region171
          $region170: #{tpu_custom_call.1} parent=155 // pred_region
            %s425 = sand.u32 1, 7
            %s426 = ssub.s32 1, %s425
            %s427 = scalar_lea.vmem %s397, %s426
            %s428 = ssub.s32 1, %s425
            %s429 = scalar_lea.vmem %s398, %s428 [#allocation2]
            %s430 = sshll.u32 1, %s425
            %s431 = ssub.s32 %s430, 1
            loop: start=0, step=1, limit=1
            $region172: #{tpu_custom_call.1} parent=170 // loop_pre_header
              _
            $region173: #{tpu_custom_call.1} parent=170 // loop_header
              %s433 = sphi 0, %s437
              %p434 = scmp.ge.s32.totalorder %s433, 1
              %s438 = sphi %s427, %s427
              %s439 = sphi %s429, %s429
            $region174: #{tpu_custom_call.1} parent=170 // loop_header_branch
              %436 = sbr.rel (%p434) target = $region178
            $region175: #{tpu_custom_call.1} parent=170 // loop_body
              %v440 = vld [vmem:[%s438] sm:%s431]
              %441 = vst [vmem:[%s439] sm:%s431] %v440
            $region176: #{tpu_custom_call.1} parent=170 // loop_footer
              %s437 = sadd.s32 1, %s433
            $region177: #{tpu_custom_call.1} parent=170 // loop_footer_branch
              %432 = sbr.rel target = $region173
            $region178: #{tpu_custom_call.1} parent=170 // loop_exit
              _
          $region171: #{tpu_custom_call.1} parent=155 // pred_fallthru
            _
        $region156: #{tpu_custom_call.1} parent=31 // pred_fallthru
          _
        // Predicated region
        $region157: #{tpu_custom_call.1} parent=31 // pred_check
          %p405 = pneg %p401
        $region158: #{tpu_custom_call.1} parent=31 // pred_check_branch
          %407 = sbr.rel (%p405) target = $region160
        $region159: #{tpu_custom_call.1} parent=31 // pred_region
          %s408 = sshll.u32 1, 1
          %s409 = ssub.s32 %s408, 1
          loop: start=0, step=1, limit=1
          $region161: #{tpu_custom_call.1} parent=159 // loop_pre_header
            _
          $region162: #{tpu_custom_call.1} parent=159 // loop_header
            %s411 = sphi 0, %s415
            %p412 = scmp.ge.s32.totalorder %s411, 1
            %s416 = sphi %s397, %s397
            %s417 = sphi %s398, %s398
          $region163: #{tpu_custom_call.1} parent=159 // loop_header_branch
            %414 = sbr.rel (%p412) target = $region167
          $region164: #{tpu_custom_call.1} parent=159 // loop_body
            %v418 = vld [vmem:[%s416] sm:%s409]
            %419 = vst [vmem:[%s417] sm:%s409] %v418
          $region165: #{tpu_custom_call.1} parent=159 // loop_footer
            %s415 = sadd.s32 1, %s411
          $region166: #{tpu_custom_call.1} parent=159 // loop_footer_branch
            %410 = sbr.rel target = $region162
          $region167: #{tpu_custom_call.1} parent=159 // loop_exit
            _
        $region160: #{tpu_custom_call.1} parent=31 // pred_fallthru
          _
        // Predicated region
        $region179: #{tpu_custom_call.1} parent=31 // pred_check
          _
        $region180: #{tpu_custom_call.1} parent=31 // pred_check_branch
          %444 = sbr.rel (0) target = $region182
        $region181: #{tpu_custom_call.1} parent=31 // pred_region
          %445 = vsyncadd %s399, 16
        $region182: #{tpu_custom_call.1} parent=31 // pred_fallthru
          _
        %s446 = sadd.s32 %s173, 5
        %s447 = sld [smem:[#allocation5 + %s446]]
        %p448 = scmp.gt.s32.totalorder %s447, 0
        %s449 = scalar_select %p448, %s447, 0
        %p450 = scmp.lt.s32.totalorder %s449, 127
        %s451 = scalar_select %p450, %s449, 127
        %s452 = scalar_lea.vmem %s1, %s451
        %s453 = scalar_lea.vmem [#allocation2], 5
        %s454 = scalar_lea.sflag [#allocation3], 5
        %p456 = scmp.lt.u32.totalorder 1, 8
        %p457 = pneg %p456
        // Predicated region
        $region183: #{tpu_custom_call.1} parent=31 // pred_check
          _
        $region184: #{tpu_custom_call.1} parent=31 // pred_check_branch
          %459 = sbr.rel (%p456) target = $region186
        $region185: #{tpu_custom_call.1} parent=31 // pred_region
          %s475 = sand.u32 1, 7
          %p476 = scmp.eq.s32.totalorder %s475, 0
          %p477 = pneg %p476
          // Predicated region
          $region198: #{tpu_custom_call.1} parent=185 // pred_check
            _
          $region199: #{tpu_custom_call.1} parent=185 // pred_check_branch
            %479 = sbr.rel (%p476) target = $region201
          $region200: #{tpu_custom_call.1} parent=185 // pred_region
            %s480 = sand.u32 1, 7
            %s481 = ssub.s32 1, %s480
            %s482 = scalar_lea.vmem %s452, %s481
            %s483 = ssub.s32 1, %s480
            %s484 = scalar_lea.vmem %s453, %s483 [#allocation2]
            %s485 = sshll.u32 1, %s480
            %s486 = ssub.s32 %s485, 1
            loop: start=0, step=1, limit=1
            $region202: #{tpu_custom_call.1} parent=200 // loop_pre_header
              _
            $region203: #{tpu_custom_call.1} parent=200 // loop_header
              %s488 = sphi 0, %s492
              %p489 = scmp.ge.s32.totalorder %s488, 1
              %s493 = sphi %s482, %s482
              %s494 = sphi %s484, %s484
            $region204: #{tpu_custom_call.1} parent=200 // loop_header_branch
              %491 = sbr.rel (%p489) target = $region208
            $region205: #{tpu_custom_call.1} parent=200 // loop_body
              %v495 = vld [vmem:[%s493] sm:%s486]
              %496 = vst [vmem:[%s494] sm:%s486] %v495
            $region206: #{tpu_custom_call.1} parent=200 // loop_footer
              %s492 = sadd.s32 1, %s488
            $region207: #{tpu_custom_call.1} parent=200 // loop_footer_branch
              %487 = sbr.rel target = $region203
            $region208: #{tpu_custom_call.1} parent=200 // loop_exit
              _
          $region201: #{tpu_custom_call.1} parent=185 // pred_fallthru
            _
        $region186: #{tpu_custom_call.1} parent=31 // pred_fallthru
          _
        // Predicated region
        $region187: #{tpu_custom_call.1} parent=31 // pred_check
          %p460 = pneg %p456
        $region188: #{tpu_custom_call.1} parent=31 // pred_check_branch
          %462 = sbr.rel (%p460) target = $region190
        $region189: #{tpu_custom_call.1} parent=31 // pred_region
          %s463 = sshll.u32 1, 1
          %s464 = ssub.s32 %s463, 1
          loop: start=0, step=1, limit=1
          $region191: #{tpu_custom_call.1} parent=189 // loop_pre_header
            _
          $region192: #{tpu_custom_call.1} parent=189 // loop_header
            %s466 = sphi 0, %s470
            %p467 = scmp.ge.s32.totalorder %s466, 1
            %s471 = sphi %s452, %s452
            %s472 = sphi %s453, %s453
          $region193: #{tpu_custom_call.1} parent=189 // loop_header_branch
            %469 = sbr.rel (%p467) target = $region197
          $region194: #{tpu_custom_call.1} parent=189 // loop_body
            %v473 = vld [vmem:[%s471] sm:%s464]
            %474 = vst [vmem:[%s472] sm:%s464] %v473
          $region195: #{tpu_custom_call.1} parent=189 // loop_footer
            %s470 = sadd.s32 1, %s466
          $region196: #{tpu_custom_call.1} parent=189 // loop_footer_branch
            %465 = sbr.rel target = $region192
          $region197: #{tpu_custom_call.1} parent=189 // loop_exit
            _
        $region190: #{tpu_custom_call.1} parent=31 // pred_fallthru
          _
        // Predicated region
        $region209: #{tpu_custom_call.1} parent=31 // pred_check
          _
        $region210: #{tpu_custom_call.1} parent=31 // pred_check_branch
          %499 = sbr.rel (0) target = $region212
        $region211: #{tpu_custom_call.1} parent=31 // pred_region
          %500 = vsyncadd %s454, 16
        $region212: #{tpu_custom_call.1} parent=31 // pred_fallthru
          _
        %s501 = sadd.s32 %s173, 6
        %s502 = sld [smem:[#allocation5 + %s501]]
        %p503 = scmp.gt.s32.totalorder %s502, 0
        %s504 = scalar_select %p503, %s502, 0
        %p505 = scmp.lt.s32.totalorder %s504, 127
        %s506 = scalar_select %p505, %s504, 127
        %s507 = scalar_lea.vmem %s1, %s506
        %s508 = scalar_lea.vmem [#allocation2], 6
        %s509 = scalar_lea.sflag [#allocation3], 6
        %p511 = scmp.lt.u32.totalorder 1, 8
        %p512 = pneg %p511
        // Predicated region
        $region213: #{tpu_custom_call.1} parent=31 // pred_check
          _
        $region214: #{tpu_custom_call.1} parent=31 // pred_check_branch
          %514 = sbr.rel (%p511) target = $region216
        $region215: #{tpu_custom_call.1} parent=31 // pred_region
          %s530 = sand.u32 1, 7
          %p531 = scmp.eq.s32.totalorder %s530, 0
          %p532 = pneg %p531
          // Predicated region
          $region228: #{tpu_custom_call.1} parent=215 // pred_check
            _
          $region229: #{tpu_custom_call.1} parent=215 // pred_check_branch
            %534 = sbr.rel (%p531) target = $region231
          $region230: #{tpu_custom_call.1} parent=215 // pred_region
            %s535 = sand.u32 1, 7
            %s536 = ssub.s32 1, %s535
            %s537 = scalar_lea.vmem %s507, %s536
            %s538 = ssub.s32 1, %s535
            %s539 = scalar_lea.vmem %s508, %s538 [#allocation2]
            %s540 = sshll.u32 1, %s535
            %s541 = ssub.s32 %s540, 1
            loop: start=0, step=1, limit=1
            $region232: #{tpu_custom_call.1} parent=230 // loop_pre_header
              _
            $region233: #{tpu_custom_call.1} parent=230 // loop_header
              %s543 = sphi 0, %s547
              %p544 = scmp.ge.s32.totalorder %s543, 1
              %s548 = sphi %s537, %s537
              %s549 = sphi %s539, %s539
            $region234: #{tpu_custom_call.1} parent=230 // loop_header_branch
              %546 = sbr.rel (%p544) target = $region238
            $region235: #{tpu_custom_call.1} parent=230 // loop_body
              %v550 = vld [vmem:[%s548] sm:%s541]
              %551 = vst [vmem:[%s549] sm:%s541] %v550
            $region236: #{tpu_custom_call.1} parent=230 // loop_footer
              %s547 = sadd.s32 1, %s543
            $region237: #{tpu_custom_call.1} parent=230 // loop_footer_branch
              %542 = sbr.rel target = $region233
            $region238: #{tpu_custom_call.1} parent=230 // loop_exit
              _
          $region231: #{tpu_custom_call.1} parent=215 // pred_fallthru
            _
        $region216: #{tpu_custom_call.1} parent=31 // pred_fallthru
          _
        // Predicated region
        $region217: #{tpu_custom_call.1} parent=31 // pred_check
          %p515 = pneg %p511
        $region218: #{tpu_custom_call.1} parent=31 // pred_check_branch
          %517 = sbr.rel (%p515) target = $region220
        $region219: #{tpu_custom_call.1} parent=31 // pred_region
          %s518 = sshll.u32 1, 1
          %s519 = ssub.s32 %s518, 1
          loop: start=0, step=1, limit=1
          $region221: #{tpu_custom_call.1} parent=219 // loop_pre_header
            _
          $region222: #{tpu_custom_call.1} parent=219 // loop_header
            %s521 = sphi 0, %s525
            %p522 = scmp.ge.s32.totalorder %s521, 1
            %s526 = sphi %s507, %s507
            %s527 = sphi %s508, %s508
          $region223: #{tpu_custom_call.1} parent=219 // loop_header_branch
            %524 = sbr.rel (%p522) target = $region227
          $region224: #{tpu_custom_call.1} parent=219 // loop_body
            %v528 = vld [vmem:[%s526] sm:%s519]
            %529 = vst [vmem:[%s527] sm:%s519] %v528
          $region225: #{tpu_custom_call.1} parent=219 // loop_footer
            %s525 = sadd.s32 1, %s521
          $region226: #{tpu_custom_call.1} parent=219 // loop_footer_branch
            %520 = sbr.rel target = $region222
          $region227: #{tpu_custom_call.1} parent=219 // loop_exit
            _
        $region220: #{tpu_custom_call.1} parent=31 // pred_fallthru
          _
        // Predicated region
        $region239: #{tpu_custom_call.1} parent=31 // pred_check
          _
        $region240: #{tpu_custom_call.1} parent=31 // pred_check_branch
          %554 = sbr.rel (0) target = $region242
        $region241: #{tpu_custom_call.1} parent=31 // pred_region
          %555 = vsyncadd %s509, 16
        $region242: #{tpu_custom_call.1} parent=31 // pred_fallthru
          _
        %s556 = sadd.s32 %s173, 7
        %s557 = sld [smem:[#allocation5 + %s556]]
        %p558 = scmp.gt.s32.totalorder %s557, 0
        %s559 = scalar_select %p558, %s557, 0
        %p560 = scmp.lt.s32.totalorder %s559, 127
        %s561 = scalar_select %p560, %s559, 127
        %s562 = scalar_lea.vmem %s1, %s561
        %s563 = scalar_lea.vmem [#allocation2], 7
        %s564 = scalar_lea.sflag [#allocation3], 7
        %p566 = scmp.lt.u32.totalorder 1, 8
        %p567 = pneg %p566
        // Predicated region
        $region243: #{tpu_custom_call.1} parent=31 // pred_check
          _
        $region244: #{tpu_custom_call.1} parent=31 // pred_check_branch
          %569 = sbr.rel (%p566) target = $region246
        $region245: #{tpu_custom_call.1} parent=31 // pred_region
          %s585 = sand.u32 1, 7
          %p586 = scmp.eq.s32.totalorder %s585, 0
          %p587 = pneg %p586
          // Predicated region
          $region258: #{tpu_custom_call.1} parent=245 // pred_check
            _
          $region259: #{tpu_custom_call.1} parent=245 // pred_check_branch
            %589 = sbr.rel (%p586) target = $region261
          $region260: #{tpu_custom_call.1} parent=245 // pred_region
            %s590 = sand.u32 1, 7
            %s591 = ssub.s32 1, %s590
            %s592 = scalar_lea.vmem %s562, %s591
            %s593 = ssub.s32 1, %s590
            %s594 = scalar_lea.vmem %s563, %s593 [#allocation2]
            %s595 = sshll.u32 1, %s590
            %s596 = ssub.s32 %s595, 1
            loop: start=0, step=1, limit=1
            $region262: #{tpu_custom_call.1} parent=260 // loop_pre_header
              _
            $region263: #{tpu_custom_call.1} parent=260 // loop_header
              %s598 = sphi 0, %s602
              %p599 = scmp.ge.s32.totalorder %s598, 1
              %s603 = sphi %s592, %s592
              %s604 = sphi %s594, %s594
            $region264: #{tpu_custom_call.1} parent=260 // loop_header_branch
              %601 = sbr.rel (%p599) target = $region268
            $region265: #{tpu_custom_call.1} parent=260 // loop_body
              %v605 = vld [vmem:[%s603] sm:%s596]
              %606 = vst [vmem:[%s604] sm:%s596] %v605
            $region266: #{tpu_custom_call.1} parent=260 // loop_footer
              %s602 = sadd.s32 1, %s598
            $region267: #{tpu_custom_call.1} parent=260 // loop_footer_branch
              %597 = sbr.rel target = $region263
            $region268: #{tpu_custom_call.1} parent=260 // loop_exit
              _
          $region261: #{tpu_custom_call.1} parent=245 // pred_fallthru
            _
        $region246: #{tpu_custom_call.1} parent=31 // pred_fallthru
          _
        // Predicated region
        $region247: #{tpu_custom_call.1} parent=31 // pred_check
          %p570 = pneg %p566
        $region248: #{tpu_custom_call.1} parent=31 // pred_check_branch
          %572 = sbr.rel (%p570) target = $region250
        $region249: #{tpu_custom_call.1} parent=31 // pred_region
          %s573 = sshll.u32 1, 1
          %s574 = ssub.s32 %s573, 1
          loop: start=0, step=1, limit=1
          $region251: #{tpu_custom_call.1} parent=249 // loop_pre_header
            _
          $region252: #{tpu_custom_call.1} parent=249 // loop_header
            %s576 = sphi 0, %s580
            %p577 = scmp.ge.s32.totalorder %s576, 1
            %s581 = sphi %s562, %s562
            %s582 = sphi %s563, %s563
          $region253: #{tpu_custom_call.1} parent=249 // loop_header_branch
            %579 = sbr.rel (%p577) target = $region257
          $region254: #{tpu_custom_call.1} parent=249 // loop_body
            %v583 = vld [vmem:[%s581] sm:%s574]
            %584 = vst [vmem:[%s582] sm:%s574] %v583
          $region255: #{tpu_custom_call.1} parent=249 // loop_footer
            %s580 = sadd.s32 1, %s576
          $region256: #{tpu_custom_call.1} parent=249 // loop_footer_branch
            %575 = sbr.rel target = $region252
          $region257: #{tpu_custom_call.1} parent=249 // loop_exit
            _
        $region250: #{tpu_custom_call.1} parent=31 // pred_fallthru
          _
        // Predicated region
        $region269: #{tpu_custom_call.1} parent=31 // pred_check
          _
        $region270: #{tpu_custom_call.1} parent=31 // pred_check_branch
          %609 = sbr.rel (0) target = $region272
        $region271: #{tpu_custom_call.1} parent=31 // pred_region
          %610 = vsyncadd %s564, 16
        $region272: #{tpu_custom_call.1} parent=31 // pred_fallthru
          _
        %s611 = smul.u32 1, 1
        %s612 = sshll.u32 %s611, 4
        %613 = dma.done [#allocation3], %s612
        %s614 = sshll.u32 %s611, 4
        %615 = dma.done %s234, %s614
        %s616 = sshll.u32 %s611, 4
        %617 = dma.done %s289, %s616
        %s618 = sshll.u32 %s611, 4
        %619 = dma.done %s344, %s618
        %s620 = sshll.u32 %s611, 4
        %621 = dma.done %s399, %s620
        %s622 = sshll.u32 %s611, 4
        %623 = dma.done %s454, %s622
        %s624 = sshll.u32 %s611, 4
        %625 = dma.done %s509, %s624
        %s626 = sshll.u32 %s611, 4
        %627 = dma.done %s564, %s626
        %v628 = vld [vmem:[#allocation2] sm:$0xff]
        %v629 = vshll.u32 %v628, 16
        %v631 = vand.u32 %v628, 4294901760
        %632 = vrot.lane.b32.xlu0 %v631, 16
        %v633 = vpop.permute.xlu0 %632
        %vm635 = vcmask 130048
        %v636 = vsel %vm635, %v629, %v633
        %s637 = scalar_lea.vmem %s2, %s172
        %v638 = vld [vmem:[%s637] sm:$0xff]
        %v639 = vadd.f32 %v636, %v638
        %vm640 = vcmask 261120
        %v641 = vsel %vm640, %v639, 0.0
        %642 = vadd.xlane.f32.xlu0 %v641
        %v643 = vpop.xlane.xlu0 %642
        %v644 = vrcp.pop 32.0
        %v645 = vmul.f32 %v643, %v644
        %v646 = vsub.f32 %v639, %v645
        %v647 = vmul.f32 %v646, %v646
        %v648 = vsel %vm640, %v647, 0.0
        %649 = vadd.xlane.f32.xlu0 %v648
        %v650 = vpop.xlane.xlu0 %649
        %v651 = vmul.f32 %v650, %v644
        %v652 = vadd.f32 %v651, 1e-05
        %v653 = vrsqrt.pop %v652
        %v654 = vmul.f32 %v646, %v653
        %v655 = vld [vmem:[%s3] sm:$0x1]
        %v657 = vlaneseq
        %v658 = vshrl.u32 %v657, 7
        %v659 = vsub.s32 0, %v658
        %v660 = vrot.slane %v655, %v659
        %v662 = vmul.f32 %v654, %v660
        %v663 = vld [vmem:[%s4] sm:$0x1]
        %v665 = vlaneseq
        %v666 = vshrl.u32 %v665, 7
        %v667 = vsub.s32 0, %v666
        %v668 = vrot.slane %v663, %v667
        %v670 = vadd.f32 %v662, %v668
        %671 = vst.msk [vmem:[%s170] sm:$0xff] %vm640, %v670
        %s672 = sand.u32 %s110, 1
        %s673 = scalar_lea.sflag [#allocation7], %s672
        %s674 = sand.u32 %s110, 1
        %s675 = smul.addr %s674, 8
        %s676 = scalar_lea.vmem [#allocation6], %s675
        // Predicated region
        $region273: #{tpu_custom_call.1} parent=31 // pred_check
          %p677 = pneg %p120
        $region274: #{tpu_custom_call.1} parent=31 // pred_check_branch
          %679 = sbr.rel (%p677) target = $region276
        $region275: #{tpu_custom_call.1} parent=31 // pred_region
          %s681 = ssub.s32 128, 128
          %682 = vsyncadd %s673, %s681
          %s683 = sadd.s32 %s30, %s29
          %s684 = smul.addr %s683, 128
          %s685 = scalar_lea.hbm %s5, %s684
          %s687 = sshll.u32 %s676, 4
          %s688 = int_to_ptr.vmem [resolvable:$true] %s687
          %690 = dma.vmem_to_hbm [thread:$0]  %s688, 128, %s685, %s673
        $region276: #{tpu_custom_call.1} parent=31 // pred_fallthru
          _
      $region32: #{tpu_custom_call.1} parent=5 // pred_fallthru
        _
      %p691 = scmp.le.s32.totalorder 2, %s20
      // Predicated region
      $region277: #{tpu_custom_call.1} parent=5 // pred_check
        %p692 = pneg %p691
      $region278: #{tpu_custom_call.1} parent=5 // pred_check_branch
        %694 = sbr.rel (%p692) target = $region280
      $region279: #{tpu_custom_call.1} parent=5 // pred_region
        %s695 = ssub.s32 %s20, 2
        // Predicated region
        $region281: #{tpu_custom_call.1} parent=279 // pred_check
          %p696 = pneg %p126
        $region282: #{tpu_custom_call.1} parent=279 // pred_check_branch
          %698 = sbr.rel (%p696) target = $region284
        $region283: #{tpu_custom_call.1} parent=279 // pred_region
          %s699 = sand.u32 %s111, 1
          %s700 = scalar_lea.sflag [#allocation7], %s699
          %s701 = sand.u32 %s111, 1
          %s702 = smul.addr %s701, 8
          %s703 = scalar_lea.vmem [#allocation6], %s702
          %704 = dma.done %s700, 128
        $region284: #{tpu_custom_call.1} parent=279 // pred_fallthru
          _
      $region280: #{tpu_custom_call.1} parent=5 // pred_fallthru
        _
    $region6: #{tpu_custom_call.1} parent=1 // loop_footer
      %s24 = sadd.s32 1, %s20
    $region7: #{tpu_custom_call.1} parent=1 // loop_footer_branch
      %19 = sbr.rel target = $region3
    $region8: #{tpu_custom_call.1} parent=1 // loop_exit
      _
    %705 = vsyncpa [#allocation7], 1
    %s706 = scalar_lea.sflag [#allocation7], 1
    %707 = vsyncpa %s706, 1
  %708 = vsyncmov [#allocation3]
  %s709 = vpop.sfrf %708
  %p710 = scmp.eq.s32.totalorder %s709, 0
  %p711 = pneg %p710
  %713 = shalt.err (%p711)
  %s714 = scalar_lea.sflag [#allocation3], 1
  %715 = vsyncmov %s714
  %s716 = vpop.sfrf %715
  %p717 = scmp.eq.s32.totalorder %s716, 0
  %p718 = pneg %p717
  %720 = shalt.err (%p718)
  %s721 = scalar_lea.sflag [#allocation3], 2
  %722 = vsyncmov %s721
  %s723 = vpop.sfrf %722
  %p724 = scmp.eq.s32.totalorder %s723, 0
  %p725 = pneg %p724
  %727 = shalt.err (%p725)
  %s728 = scalar_lea.sflag [#allocation3], 3
  %729 = vsyncmov %s728
  %s730 = vpop.sfrf %729
  %p731 = scmp.eq.s32.totalorder %s730, 0
  %p732 = pneg %p731
  %734 = shalt.err (%p732)
  %s735 = scalar_lea.sflag [#allocation3], 4
  %736 = vsyncmov %s735
  %s737 = vpop.sfrf %736
  %p738 = scmp.eq.s32.totalorder %s737, 0
  %p739 = pneg %p738
  %741 = shalt.err (%p739)
  %s742 = scalar_lea.sflag [#allocation3], 5
  %743 = vsyncmov %s742
  %s744 = vpop.sfrf %743
  %p745 = scmp.eq.s32.totalorder %s744, 0
  %p746 = pneg %p745
  %748 = shalt.err (%p746)
  %s749 = scalar_lea.sflag [#allocation3], 6
  %750 = vsyncmov %s749
  %s751 = vpop.sfrf %750
  %p752 = scmp.eq.s32.totalorder %s751, 0
  %p753 = pneg %p752
  %755 = shalt.err (%p753)
  %s756 = scalar_lea.sflag [#allocation3], 7
  %757 = vsyncmov %s756
  %s758 = vpop.sfrf %757
  %p759 = scmp.eq.s32.totalorder %s758, 0
  %p760 = pneg %p759
  %762 = shalt.err (%p760)

</llo_original>
